<compile_context>
chip_gen: v5e
topology: v5e:2x2
jax: 0.10.0
libtpu: 0.0.40
codegen_flags: <defaults>
</compile_context>

<pallas_src>
import functools
import numpy as np
import jax
import jax.numpy as jnp
from jax import lax
from jax.experimental import pallas as pl
from jax.experimental.pallas import tpu as pltpu

EPS = 1e-5           # nn.LayerNorm default eps
MASK_BIAS = -1e30    # additive bias applied at masked positions


def _layer_norm(x, gamma, beta):
    mu = jnp.mean(x, axis=-1, keepdims=True)
    var = jnp.mean(jnp.square(x - mu), axis=-1, keepdims=True)
    return (x - mu) * lax.rsqrt(var + EPS) * gamma + beta


# ---------------------------------------------------------------------------
# Pass 1: LN1 + fused Q|K|V projection (computed once per token tile)
# ---------------------------------------------------------------------------
def qkv_proj_kernel(x_ref, g_ref, b_ref, w_ref, bias_ref, q_ref, k_ref, v_ref, *, head_size):
    H = q_ref.shape[-1]
    h = _layer_norm(x_ref[0], g_ref[...], b_ref[...]).astype(jnp.bfloat16)
    qkv = jnp.dot(h, w_ref[...], preferred_element_type=jnp.float32) + bias_ref[...]
    # fold the 1/sqrt(head_size) softmax scale into q once (O(T*H) instead of O(T*T))
    q_ref[0] = (qkv[:, :H] * (float(head_size) ** -0.5)).astype(q_ref.dtype)
    k_ref[0] = qkv[:, H:2 * H].astype(k_ref.dtype)
    v_ref[0] = qkv[:, 2 * H:].astype(v_ref.dtype)


# ---------------------------------------------------------------------------
# Pass 2: flash attention (online softmax over kv tiles)
# ---------------------------------------------------------------------------
def flash_attn_kernel(q_ref, k_ref, v_ref, mask_ref, o_ref,
                      acc_scr, m_scr, l_scr, *, n_heads, head_size, exp_in_bf16):
    kv = pl.program_id(2)

    @pl.when(kv == 0)
    def _init():
        acc_scr[...] = jnp.zeros(acc_scr.shape, acc_scr.dtype)
        m_scr[...] = jnp.full(m_scr.shape, -jnp.inf, m_scr.dtype)
        l_scr[...] = jnp.zeros(l_scr.shape, l_scr.dtype)

    # compact int8 mask -> additive f32 bias, built once per (q,kv) tile, shared by all heads
    bias = jnp.where(mask_ref[0] > 0, jnp.float32(0.0), jnp.float32(MASK_BIAS))

    q_mat = q_ref[0]    # (tq, H)  bf16, pre-scaled
    k_mat = k_ref[0]    # (tkv, H) bf16
    v_mat = v_ref[0]    # (tkv, H) bf16
    qkt_dims = (((1,), (1,)), ((), ()))   # contract last dims: q @ k^T without a transpose

    # TODO(synk): for n_heads >= 8 switch to lax.fori_loop over heads (bounded live ranges), and
    # for head_size == 64 process heads in 128-lane pairs so the acc_scr rescale uses unmasked vst.
    for h in range(n_heads):
        c0 = h * head_size
        qh = q_mat[:, c0:c0 + head_size]
        kh = k_mat[:, c0:c0 + head_size]
        vh = v_mat[:, c0:c0 + head_size]

        s = lax.dot_general(qh, kh, qkt_dims, preferred_element_type=jnp.float32) + bias
        m_prev = m_scr[:, h:h + 1]                                        # (tq, 1)
        m_new = jnp.maximum(m_prev, jnp.max(s, axis=-1, keepdims=True))
        alpha = jnp.exp(m_prev - m_new)
        shifted = s - m_new
        if exp_in_bf16:
            # bf16 EUP path (v6e/v7x): exp is the EUP hot spot; p is bf16 for the PV matmul anyway.
            p = jnp.exp(shifted.astype(jnp.bfloat16))
            row_sum = jnp.sum(p.astype(jnp.float32), axis=-1, keepdims=True)
            pv = jnp.dot(p, vh, preferred_element_type=jnp.float32)
        else:
            # f32 EUP path (v5e has no bf16 EUP)
            p = jnp.exp(shifted)
            row_sum = jnp.sum(p, axis=-1, keepdims=True)
            pv = jnp.dot(p.astype(jnp.bfloat16), vh, preferred_element_type=jnp.float32)

        l_scr[:, h:h + 1] = alpha * l_scr[:, h:h + 1] + row_sum
        acc_scr[:, c0:c0 + head_size] = alpha * acc_scr[:, c0:c0 + head_size] + pv
        m_scr[:, h:h + 1] = m_new

    @pl.when(kv == pl.num_programs(2) - 1)
    def _finalize():
        for h in range(n_heads):
            c0 = h * head_size
            # exact divide (runs once per q tile; avoids approx-reciprocal error)
            acc_scr[:, c0:c0 + head_size] = acc_scr[:, c0:c0 + head_size] / l_scr[:, h:h + 1]
        o_ref[0] = acc_scr[...].astype(o_ref.dtype)


# ---------------------------------------------------------------------------
# Pass 3: out-proj + residual, LN2 + MLP(gelu) + residual
# ---------------------------------------------------------------------------
def out_mlp_kernel(ctx_ref, x_ref, wo_ref, bo_ref, g2_ref, b2_ref,
                   wu_ref, bu_ref, wd_ref, bd_ref, o_ref):
    attn = jnp.dot(ctx_ref[0], wo_ref[...], preferred_element_type=jnp.float32) + bo_ref[...]
    x1 = x_ref[0] + attn                                   # residual 1 (f32)
    h2 = _layer_norm(x1, g2_ref[...], b2_ref[...]).astype(jnp.bfloat16)
    u = jnp.dot(h2, wu_ref[...], preferred_element_type=jnp.float32) + bu_ref[...]
    u = jax.nn.gelu(u, approximate=False)                  # ACT2FN["gelu"] == exact erf GELU
    d = jnp.dot(u.astype(jnp.bfloat16), wd_ref[...], preferred_element_type=jnp.float32) + bd_ref[...]
    o_ref[0] = (x1 + d).astype(o_ref.dtype)                # residual 2


# ---------------------------------------------------------------------------
# Host-side helpers
# ---------------------------------------------------------------------------
def _default_vmem_limit():
    # Raise Mosaic's 32 MiB scoped-VMEM default when the chip has headroom; None = default.
    try:
        cap = pltpu.get_tpu_info().vmem_capacity_bytes
        return int(min(cap * 3 // 4, 100 * 1024 * 1024))
    except Exception:
        return None


def _bf16_exp_supported():
    # bf16 EUP exists on v6e/v7x; keep exp in f32 on v5e and older (and when detection fails).
    try:
        kind = jax.devices()[0].device_kind.lower()
    except Exception:
        return False
    return not any(tag in kind for tag in ("v2", "v3", "v4", "v5"))


def _pick_tile(T, cap):
    for t in (cap, cap // 2, cap // 4, 128):
        if 0 < t <= T and T % t == 0 and t % 128 == 0:
            return t
    return T   # short sequences: one full-extent tile (layout constraint satisfied by equality)


def prepare_params(params):
    """One-time packing: fused QKV weights and bf16 casts (hoisted out of the hot path)."""
    f32, bf16 = jnp.float32, jnp.bfloat16
    return dict(
        ln1_g=params["ln1_g"].astype(f32), ln1_b=params["ln1_b"].astype(f32),
        wqkv=jnp.concatenate([params["wq"], params["wk"], params["wv"]], axis=1).astype(bf16),
        bqkv=jnp.concatenate([params["bq"], params["bk"], params["bv"]], axis=1).astype(f32),
        wo=params["wo"].astype(bf16), bo=params["bo"].astype(f32),
        ln2_g=params["ln2_g"].astype(f32), ln2_b=params["ln2_b"].astype(f32),
        w_up=params["w_up"].astype(bf16), b_up=params["b_up"].astype(f32),
        w_down=params["w_down"].astype(bf16), b_down=params["b_down"].astype(f32),
    )


def prepare_mask(attn_mask):
    """One-time compact mask: int8 (1 = attend, 0 = masked)."""
    return (attn_mask > 0).astype(jnp.int8)


def neural_encoder_layer(x, mask_i8, prep, n_heads, *, tq=None, tkv=None, tm=None,
                         use_pipeline_modes=True, vmem_limit_bytes="auto", exp_in_bf16="auto"):
    B, T, H = x.shape
    I = prep["w_up"].shape[1]
    head_size = H // n_heads
    assert H == n_heads * head_size

    # v7x-aware defaults: tq <= 256 keeps the flash working set inside the 64 MiB budget while
    # tkv up to 512 keeps the rescale frequency low.  (For B=1 on v7x pick tq so T/tq is even.)
    tq = tq or _pick_tile(T, 256)
    tkv = tkv or _pick_tile(T, 512)
    tm = tm or _pick_tile(T, 256)
    assert T % tq == 0 and T % tkv == 0 and T % tm == 0

    if vmem_limit_bytes == "auto":
        vmem_limit_bytes = _default_vmem_limit()
    if exp_in_bf16 == "auto":
        exp_in_bf16 = _bf16_exp_supported()

    bf16 = jnp.bfloat16

    def const_spec(shape, n_axes):
        zeros = (0,) * len(shape)
        index_map = (lambda i, j: zeros) if n_axes == 2 else (lambda i, j, k: zeros)
        if use_pipeline_modes:
            # same block every grid step -> a single VMEM buffer suffices
            return pl.BlockSpec(shape, index_map, pipeline_mode=pl.Buffered(1))
        return pl.BlockSpec(shape, index_map)

    # ---- pass 1: LN1 + fused Q|K|V projection, once per token tile ----
    q, k, v = pl.pallas_call(
        functools.partial(qkv_proj_kernel, head_size=head_size),
        out_shape=(jax.ShapeDtypeStruct((B, T, H), bf16),) * 3,
        grid=(B, T // tm),
        in_specs=[
            pl.BlockSpec((1, tm, H), lambda b, i: (b, i, 0)),            # x tile
            const_spec((1, H), 2), const_spec((1, H), 2),                # ln1 gamma / beta
            const_spec((H, 3 * H), 2), const_spec((1, 3 * H), 2),        # fused wqkv / bqkv
        ],
        out_specs=[pl.BlockSpec((1, tm, H), lambda b, i: (b, i, 0))] * 3,
        compiler_params=pltpu.CompilerParams(
            dimension_semantics=("parallel", "parallel"),
            vmem_limit_bytes=vmem_limit_bytes),
    )(x, prep["ln1_g"], prep["ln1_b"], prep["wqkv"], prep["bqkv"])

    # ---- pass 2: flash attention over (q-tile, kv-tile) ----
    if use_pipeline_modes:
        # q tile is constant over the kv axis -> single buffer (re-DMA amortized over n_kv steps)
        q_spec = pl.BlockSpec((1, tq, H), lambda b, qi, kv: (b, qi, 0),
                              pipeline_mode=pl.Buffered(1))
    else:
        q_spec = pl.BlockSpec((1, tq, H), lambda b, qi, kv: (b, qi, 0))

    ctx = pl.pallas_call(
        functools.partial(flash_attn_kernel, n_heads=n_heads, head_size=head_size,
                          exp_in_bf16=exp_in_bf16),
        out_shape=jax.ShapeDtypeStruct((B, T, H), bf16),
        grid=(B, T // tq, T // tkv),
        in_specs=[
            q_spec,
            pl.BlockSpec((1, tkv, H), lambda b, qi, kv: (b, kv, 0)),     # k tile (streamed)
            pl.BlockSpec((1, tkv, H), lambda b, qi, kv: (b, kv, 0)),     # v tile (streamed)
            pl.BlockSpec((1, tq, tkv), lambda b, qi, kv: (b, qi, kv)),   # int8 mask tile
        ],
        out_specs=pl.BlockSpec((1, tq, H), lambda b, qi, kv: (b, qi, 0)),
        scratch_shapes=[
            pltpu.VMEM((tq, H), jnp.float32),         # attention accumulator slab (lane-dense)
            pltpu.VMEM((tq, n_heads), jnp.float32),   # running row max (heads along lanes)
            pltpu.VMEM((tq, n_heads), jnp.float32),   # running softmax denominator
        ],
        compiler_params=pltpu.CompilerParams(
            dimension_semantics=("parallel", "parallel", "arbitrary"),
            vmem_limit_bytes=vmem_limit_bytes),
    )(q, k, v, mask_i8)

    # ---- pass 3: out-proj + residual, LN2 + MLP + residual (MLP weights out of the flash loop) ----
    out = pl.pallas_call(
        out_mlp_kernel,
        out_shape=jax.ShapeDtypeStruct((B, T, H), x.dtype),
        grid=(B, T // tm),
        in_specs=[
            pl.BlockSpec((1, tm, H), lambda b, i: (b, i, 0)),            # attention context
            pl.BlockSpec((1, tm, H), lambda b, i: (b, i, 0)),            # residual x
            const_spec((H, H), 2), const_spec((1, H), 2),                # wo / bo
            const_spec((1, H), 2), const_spec((1, H), 2),                # ln2 gamma / beta
            const_spec((H, I), 2), const_spec((1, I), 2),                # w_up / b_up
            const_spec((I, H), 2), const_spec((1, H), 2),                # w_down / b_down
        ],
        out_specs=pl.BlockSpec((1, tm, H), lambda b, i: (b, i, 0)),
        compiler_params=pltpu.CompilerParams(
            dimension_semantics=("parallel", "parallel"),
            vmem_limit_bytes=vmem_limit_bytes),
    )(ctx, x, prep["wo"], prep["bo"], prep["ln2_g"], prep["ln2_b"],
      prep["w_up"], prep["b_up"], prep["w_down"], prep["b_down"])
    return out


# ---------------------------------------------------------------------------
# Pure-JAX reference and parameter init
# ---------------------------------------------------------------------------
def reference(x, attn_mask, p, n_heads):
    """Pure-JAX (f32) reference mirroring the PyTorch forward (eval mode)."""
    B, T, H = x.shape
    hs = H // n_heads

    def ln(v, g, b):
        mu = jnp.mean(v, -1, keepdims=True)
        var = jnp.mean((v - mu) ** 2, -1, keepdims=True)
        return (v - mu) / jnp.sqrt(var + EPS) * g + b

    h = ln(x, p["ln1_g"], p["ln1_b"])
    q = h @ p["wq"] + p["bq"]
    k = h @ p["wk"] + p["bk"]
    v = h @ p["wv"] + p["bv"]
    q = q.reshape(B, T, n_heads, hs).transpose(0, 2, 1, 3)
    k = k.reshape(B, T, n_heads, hs).transpose(0, 2, 1, 3)
    v = v.reshape(B, T, n_heads, hs).transpose(0, 2, 1, 3)
    scores = jnp.einsum("bhtd,bhsd->bhts", q, k) / np.sqrt(hs)
    scores = jnp.where(attn_mask[:, None] > 0, scores, MASK_BIAS)
    pw = jax.nn.softmax(scores, axis=-1)
    out = jnp.einsum("bhts,bhsd->bhtd", pw, v)
    out = out.transpose(0, 2, 1, 3).reshape(B, T, H)
    x1 = x + (out @ p["wo"] + p["bo"])
    h2 = ln(x1, p["ln2_g"], p["ln2_b"])
    u = jax.nn.gelu(h2 @ p["w_up"] + p["b_up"], approximate=False)
    return x1 + (u @ p["w_down"] + p["b_down"])


def init_params(key, H, I, n_layers=4, fixup_init=True):
    ks = jax.random.split(key, 6)

    def lin(k, fan_in, fan_out):
        # deterministic small init (weights stored pre-transposed: (in, out))
        return jax.random.normal(k, (fan_in, fan_out), jnp.float32) * 0.05

    wq = lin(ks[0], H, H); wk = lin(ks[1], H, H); wv = lin(ks[2], H, H); wo = lin(ks[3], H, H)
    w_up = lin(ks[4], H, I); w_down = lin(ks[5], I, H)
    if fixup_init:
        s = 0.67 * n_layers ** (-0.25)
        wo = s * wo; w_up = s * w_up; w_down = s * w_down     # *_proj.weight
        wv = s * (wv * 2 ** 0.5)                              # value.weight
    z = lambda n: jnp.zeros((1, n), jnp.float32)
    return dict(
        ln1_g=jnp.ones((1, H), jnp.float32), ln1_b=z(H),
        wq=wq, bq=z(H), wk=wk, bk=z(H), wv=wv, bv=z(H), wo=wo, bo=z(H),
        ln2_g=jnp.ones((1, H), jnp.float32), ln2_b=z(H),
        w_up=w_up, b_up=z(I), w_down=w_down, b_down=z(H),
    )


if __name__ == "__main__":
    # Small shapes, but T large enough (256 with 128-wide tiles) to exercise the 2x2 flash tiling.
    B, T, H, n_heads = 2, 256, 32, 4
    I = 2 * H  # inter_size

    key = jax.random.PRNGKey(0)
    kx, km, kp = jax.random.split(key, 3)
    x = jax.random.normal(kx, (B, T, H), jnp.float32)
    # mask: 1.0 = attend; keep the diagonal attendable so no row is fully masked
    mask = (jax.random.uniform(km, (B, T, T)) < 0.7).astype(jnp.float32)
    mask = jnp.maximum(mask, jnp.eye(T, dtype=jnp.float32)[None])
    params = init_params(kp, H, I)

    # one-time packing (weights + compact mask) hoisted out of the hot path
    prep = prepare_params(params)
    mask_i8 = prepare_mask(mask)

    run = functools.partial(neural_encoder_layer, x, mask_i8, prep, n_heads,
                            tq=128, tkv=128, tm=128)
    try:
        out = jax.block_until_ready(run())
    except Exception:
        # Portability fallback: single-buffered blocks / raised VMEM limit / bf16 exp are pure
        # perf knobs — retry with conservative defaults if this build rejects any of them.
        out = jax.block_until_ready(run(use_pipeline_modes=False, vmem_limit_bytes=None,
                                        exp_in_bf16=False))

    ref = reference(x, mask, params, n_heads)
    # bf16 matmul inputs / bf16 HBM intermediates (f32 accumulation) -> looser tolerance than f32
    np.testing.assert_allclose(np.asarray(out), np.asarray(ref), rtol=2e-2, atol=2e-2)

    print("KERNEL_OK")
</pallas_src>

<mosaic_0001>
module attributes {stable_mosaic.version = 11 : i64} {
  func.func @qkv_proj_kernel(%arg0: i32, %arg1: i32, %arg2: memref<1x128x32xf32, #tpu.memory_space<vmem>>, %arg3: memref<1x32xf32, #tpu.memory_space<vmem>>, %arg4: memref<1x32xf32, #tpu.memory_space<vmem>>, %arg5: memref<32x96xbf16, #tpu.memory_space<vmem>>, %arg6: memref<1x96xf32, #tpu.memory_space<vmem>>, %arg7: memref<1x128x32xbf16, #tpu.memory_space<vmem>>, %arg8: memref<1x128x32xbf16, #tpu.memory_space<vmem>>, %arg9: memref<1x128x32xbf16, #tpu.memory_space<vmem>>) attributes {dimension_semantics = [#tpu.dimension_semantics<parallel>, #tpu.dimension_semantics<parallel>], iteration_bounds = array<i64: 2, 2>, scalar_prefetch = 0 : i64, scratch_operands = 0 : i64, tpu.core_type = #tpu.core_type<tc>, window_params = [{transform_indices = @transform_0, window_bounds = array<i64: 1, 128, 32>}, {pipeline_mode = #tpu.pipeline_mode<synchronous>, transform_indices = @transform_1, window_bounds = array<i64: 1, 32>}, {pipeline_mode = #tpu.pipeline_mode<synchronous>, transform_indices = @transform_2, window_bounds = array<i64: 1, 32>}, {pipeline_mode = #tpu.pipeline_mode<synchronous>, transform_indices = @transform_3, window_bounds = array<i64: 32, 96>}, {pipeline_mode = #tpu.pipeline_mode<synchronous>, transform_indices = @transform_4, window_bounds = array<i64: 1, 96>}, {transform_indices = @transform_5, window_bounds = array<i64: 1, 128, 32>}, {transform_indices = @transform_6, window_bounds = array<i64: 1, 128, 32>}, {transform_indices = @transform_7, window_bounds = array<i64: 1, 128, 32>}]} {
    %c0 = arith.constant 0 : index
    %c0_0 = arith.constant 0 : index
    %c0_1 = arith.constant 0 : index
    %0 = vector.load %arg2[%c0, %c0_0, %c0_1] : memref<1x128x32xf32, #tpu.memory_space<vmem>>, vector<1x128x32xf32>
    %1 = vector.shape_cast %0 : vector<1x128x32xf32> to vector<128x32xf32>
    %c0_2 = arith.constant 0 : index
    %c0_3 = arith.constant 0 : index
    %2 = vector.load %arg3[%c0_2, %c0_3] : memref<1x32xf32, #tpu.memory_space<vmem>>, vector<1x32xf32>
    %c0_4 = arith.constant 0 : index
    %c0_5 = arith.constant 0 : index
    %3 = vector.load %arg4[%c0_4, %c0_5] : memref<1x32xf32, #tpu.memory_space<vmem>>, vector<1x32xf32>
    %cst = arith.constant dense<0.000000e+00> : vector<128xf32>
    %4 = vector.multi_reduction <add>, %1, %cst [1] : vector<128x32xf32> to vector<128xf32>
    %5 = vector.shape_cast %4 : vector<128xf32> to vector<128x1xf32>
    %cst_6 = arith.constant 3.200000e+01 : f32
    %6 = vector.broadcast %cst_6 : f32 to vector<128x1xf32>
    %7 = arith.divf %5, %6 : vector<128x1xf32>
    %8 = vector.broadcast %7 : vector<128x1xf32> to vector<128x32xf32>
    %9 = arith.subf %1, %8 : vector<128x32xf32>
    %10 = arith.mulf %9, %9 : vector<128x32xf32>
    %cst_7 = arith.constant dense<0.000000e+00> : vector<128xf32>
    %11 = vector.multi_reduction <add>, %10, %cst_7 [1] : vector<128x32xf32> to vector<128xf32>
    %12 = vector.shape_cast %11 : vector<128xf32> to vector<128x1xf32>
    %cst_8 = arith.constant 3.200000e+01 : f32
    %13 = vector.broadcast %cst_8 : f32 to vector<128x1xf32>
    %14 = arith.divf %12, %13 : vector<128x1xf32>
    %15 = vector.broadcast %7 : vector<128x1xf32> to vector<128x32xf32>
    %16 = arith.subf %1, %15 : vector<128x32xf32>
    %cst_9 = arith.constant 9.99999974E-6 : f32
    %17 = vector.broadcast %cst_9 : f32 to vector<128x1xf32>
    %18 = arith.addf %14, %17 : vector<128x1xf32>
    %19 = math.rsqrt %18 : vector<128x1xf32>
    %20 = vector.broadcast %19 : vector<128x1xf32> to vector<128x32xf32>
    %21 = arith.mulf %16, %20 : vector<128x32xf32>
    %22 = vector.broadcast %2 : vector<1x32xf32> to vector<128x32xf32>
    %23 = arith.mulf %21, %22 : vector<128x32xf32>
    %24 = vector.broadcast %3 : vector<1x32xf32> to vector<128x32xf32>
    %25 = arith.addf %23, %24 : vector<128x32xf32>
    %26 = arith.truncf %25 : vector<128x32xf32> to vector<128x32xbf16>
    %c0_10 = arith.constant 0 : index
    %c0_11 = arith.constant 0 : index
    %27 = vector.load %arg5[%c0_10, %c0_11] : memref<32x96xbf16, #tpu.memory_space<vmem>>, vector<32x96xbf16>
    %cst_12 = arith.constant dense<0.000000e+00> : vector<128x96xf32>
    %28 = tpu.matmul %26, %27, %cst_12 {dimension_numbers = #tpu.dot_dimension_numbers<[1], [0], [0], [1], [0, 0, 1, 1], [], []>} : vector<128x32xbf16>, vector<32x96xbf16>, vector<128x96xf32> -> vector<128x96xf32>
    %c0_13 = arith.constant 0 : index
    %c0_14 = arith.constant 0 : index
    %29 = vector.load %arg6[%c0_13, %c0_14] : memref<1x96xf32, #tpu.memory_space<vmem>>, vector<1x96xf32>
    %30 = vector.broadcast %29 : vector<1x96xf32> to vector<128x96xf32>
    %31 = arith.addf %28, %30 : vector<128x96xf32>
    %32 = vector.extract_strided_slice %31 {offsets = [0, 0], sizes = [128, 32], strides = [1, 1]} : vector<128x96xf32> to vector<128x32xf32>
    %cst_15 = arith.constant 0.353553385 : f32
    %33 = vector.broadcast %cst_15 : f32 to vector<128x32xf32>
    %34 = arith.mulf %32, %33 : vector<128x32xf32>
    %35 = arith.truncf %34 : vector<128x32xf32> to vector<128x32xbf16>
    %c0_16 = arith.constant 0 : index
    %c0_17 = arith.constant 0 : index
    %c0_18 = arith.constant 0 : index
    %36 = vector.load %arg7[%c0_16, %c0_17, %c0_18] : memref<1x128x32xbf16, #tpu.memory_space<vmem>>, vector<1x128x32xbf16>
    %37 = vector.shape_cast %36 : vector<1x128x32xbf16> to vector<128x32xbf16>
    %38 = vector.shape_cast %35 : vector<128x32xbf16> to vector<1x128x32xbf16>
    tpu.vector_store %arg7[%c0_16, %c0_17, %c0_18], %38 {strides = array<i32>} : memref<1x128x32xbf16, #tpu.memory_space<vmem>>, vector<1x128x32xbf16>,
    %39 = vector.extract_strided_slice %31 {offsets = [0, 32], sizes = [128, 32], strides = [1, 1]} : vector<128x96xf32> to vector<128x32xf32>
    %40 = arith.truncf %39 : vector<128x32xf32> to vector<128x32xbf16>
    %c0_19 = arith.constant 0 : index
    %c0_20 = arith.constant 0 : index
    %c0_21 = arith.constant 0 : index
    %41 = vector.load %arg8[%c0_19, %c0_20, %c0_21] : memref<1x128x32xbf16, #tpu.memory_space<vmem>>, vector<1x128x32xbf16>
    %42 = vector.shape_cast %41 : vector<1x128x32xbf16> to vector<128x32xbf16>
    %43 = vector.shape_cast %40 : vector<128x32xbf16> to vector<1x128x32xbf16>
    tpu.vector_store %arg8[%c0_19, %c0_20, %c0_21], %43 {strides = array<i32>} : memref<1x128x32xbf16, #tpu.memory_space<vmem>>, vector<1x128x32xbf16>,
    %44 = vector.extract_strided_slice %31 {offsets = [0, 64], sizes = [128, 32], strides = [1, 1]} : vector<128x96xf32> to vector<128x32xf32>
    %45 = arith.truncf %44 : vector<128x32xf32> to vector<128x32xbf16>
    %c0_22 = arith.constant 0 : index
    %c0_23 = arith.constant 0 : index
    %c0_24 = arith.constant 0 : index
    %46 = vector.load %arg9[%c0_22, %c0_23, %c0_24] : memref<1x128x32xbf16, #tpu.memory_space<vmem>>, vector<1x128x32xbf16>
    %47 = vector.shape_cast %46 : vector<1x128x32xbf16> to vector<128x32xbf16>
    %48 = vector.shape_cast %45 : vector<128x32xbf16> to vector<1x128x32xbf16>
    tpu.vector_store %arg9[%c0_22, %c0_23, %c0_24], %48 {strides = array<i32>} : memref<1x128x32xbf16, #tpu.memory_space<vmem>>, vector<1x128x32xbf16>,
    return
  }
  func.func @transform_0(%arg0: i32, %arg1: i32) -> (i32, i32, i32) {
    %c0_i32 = arith.constant 0 : i32
    %c0_i32_0 = arith.constant 0 : i32
    return %arg0, %arg1, %c0_i32 : i32, i32, i32
  }
  func.func @transform_1(%arg0: i32, %arg1: i32) -> (i32, i32) {
    %c0_i32 = arith.constant 0 : i32
    %c0_i32_0 = arith.constant 0 : i32
    %c0_i32_1 = arith.constant 0 : i32
    return %c0_i32, %c0_i32_0 : i32, i32
  }
  func.func @transform_2(%arg0: i32, %arg1: i32) -> (i32, i32) {
    %c0_i32 = arith.constant 0 : i32
    %c0_i32_0 = arith.constant 0 : i32
    %c0_i32_1 = arith.constant 0 : i32
    return %c0_i32, %c0_i32_0 : i32, i32
  }
  func.func @transform_3(%arg0: i32, %arg1: i32) -> (i32, i32) {
    %c0_i32 = arith.constant 0 : i32
    %c0_i32_0 = arith.constant 0 : i32
    %c0_i32_1 = arith.constant 0 : i32
    return %c0_i32, %c0_i32_0 : i32, i32
  }
  func.func @transform_4(%arg0: i32, %arg1: i32) -> (i32, i32) {
    %c0_i32 = arith.constant 0 : i32
    %c0_i32_0 = arith.constant 0 : i32
    %c0_i32_1 = arith.constant 0 : i32
    return %c0_i32, %c0_i32_0 : i32, i32
  }
  func.func @transform_5(%arg0: i32, %arg1: i32) -> (i32, i32, i32) {
    %c0_i32 = arith.constant 0 : i32
    %c0_i32_0 = arith.constant 0 : i32
    return %arg0, %arg1, %c0_i32 : i32, i32, i32
  }
  func.func @transform_6(%arg0: i32, %arg1: i32) -> (i32, i32, i32) {
    %c0_i32 = arith.constant 0 : i32
    %c0_i32_0 = arith.constant 0 : i32
    return %arg0, %arg1, %c0_i32 : i32, i32, i32
  }
  func.func @transform_7(%arg0: i32, %arg1: i32) -> (i32, i32, i32) {
    %c0_i32 = arith.constant 0 : i32
    %c0_i32_0 = arith.constant 0 : i32
    return %arg0, %arg1, %c0_i32 : i32, i32, i32
  }
}

module attributes {stable_mosaic.version = 11 : i64} {
  func.func @qkv_proj_kernel(%arg0: i32, %arg1: i32, %arg2: memref<1x128x32xf32, #tpu.memory_space<vmem>>, %arg3: memref<1x32xf32, #tpu.memory_space<vmem>>, %arg4: memref<1x32xf32, #tpu.memory_space<vmem>>, %arg5: memref<32x96xbf16, #tpu.memory_space<vmem>>, %arg6: memref<1x96xf32, #tpu.memory_space<vmem>>, %arg7: memref<1x128x32xbf16, #tpu.memory_space<vmem>>, %arg8: memref<1x128x32xbf16, #tpu.memory_space<vmem>>, %arg9: memref<1x128x32xbf16, #tpu.memory_space<vmem>>) attributes {dimension_semantics = [#tpu.dimension_semantics<parallel>, #tpu.dimension_semantics<parallel>], iteration_bounds = array<i64: 2, 2>, scalar_prefetch = 0 : i64, scratch_operands = 0 : i64, tpu.core_type = #tpu.core_type<tc>, window_params = [{transform_indices = @transform_0, window_bounds = array<i64: 1, 128, 32>}, {pipeline_mode = #tpu.pipeline_mode<synchronous>, transform_indices = @transform_1, window_bounds = array<i64: 1, 32>}, {pipeline_mode = #tpu.pipeline_mode<synchronous>, transform_indices = @transform_2, window_bounds = array<i64: 1, 32>}, {pipeline_mode = #tpu.pipeline_mode<synchronous>, transform_indices = @transform_3, window_bounds = array<i64: 32, 96>}, {pipeline_mode = #tpu.pipeline_mode<synchronous>, transform_indices = @transform_4, window_bounds = array<i64: 1, 96>}, {transform_indices = @transform_5, window_bounds = array<i64: 1, 128, 32>}, {transform_indices = @transform_6, window_bounds = array<i64: 1, 128, 32>}, {transform_indices = @transform_7, window_bounds = array<i64: 1, 128, 32>}]} {
    %c0 = arith.constant 0 : index
    %c0_0 = arith.constant 0 : index
    %c0_1 = arith.constant 0 : index
    %0 = vector.load %arg2[%c0, %c0_0, %c0_1] : memref<1x128x32xf32, #tpu.memory_space<vmem>>, vector<1x128x32xf32>
    %1 = vector.shape_cast %0 : vector<1x128x32xf32> to vector<128x32xf32>
    %c0_2 = arith.constant 0 : index
    %c0_3 = arith.constant 0 : index
    %2 = vector.load %arg3[%c0_2, %c0_3] : memref<1x32xf32, #tpu.memory_space<vmem>>, vector<1x32xf32>
    %c0_4 = arith.constant 0 : index
    %c0_5 = arith.constant 0 : index
    %3 = vector.load %arg4[%c0_4, %c0_5] : memref<1x32xf32, #tpu.memory_space<vmem>>, vector<1x32xf32>
    %cst = arith.constant dense<0.000000e+00> : vector<128xf32>
    %4 = vector.multi_reduction <add>, %1, %cst [1] : vector<128x32xf32> to vector<128xf32>
    %5 = vector.shape_cast %4 : vector<128xf32> to vector<128x1xf32>
    %cst_6 = arith.constant 3.200000e+01 : f32
    %6 = vector.broadcast %cst_6 : f32 to vector<128x1xf32>
    %7 = arith.divf %5, %6 : vector<128x1xf32>
    %8 = vector.broadcast %7 : vector<128x1xf32> to vector<128x32xf32>
    %9 = arith.subf %1, %8 : vector<128x32xf32>
    %10 = arith.mulf %9, %9 : vector<128x32xf32>
    %cst_7 = arith.constant dense<0.000000e+00> : vector<128xf32>
    %11 = vector.multi_reduction <add>, %10, %cst_7 [1] : vector<128x32xf32> to vector<128xf32>
    %12 = vector.shape_cast %11 : vector<128xf32> to vector<128x1xf32>
    %cst_8 = arith.constant 3.200000e+01 : f32
    %13 = vector.broadcast %cst_8 : f32 to vector<128x1xf32>
    %14 = arith.divf %12, %13 : vector<128x1xf32>
    %15 = vector.broadcast %7 : vector<128x1xf32> to vector<128x32xf32>
    %16 = arith.subf %1, %15 : vector<128x32xf32>
    %cst_9 = arith.constant 9.99999974E-6 : f32
    %17 = vector.broadcast %cst_9 : f32 to vector<128x1xf32>
    %18 = arith.addf %14, %17 : vector<128x1xf32>
    %19 = math.rsqrt %18 : vector<128x1xf32>
    %20 = vector.broadcast %19 : vector<128x1xf32> to vector<128x32xf32>
    %21 = arith.mulf %16, %20 : vector<128x32xf32>
    %22 = vector.broadcast %2 : vector<1x32xf32> to vector<128x32xf32>
    %23 = arith.mulf %21, %22 : vector<128x32xf32>
    %24 = vector.broadcast %3 : vector<1x32xf32> to vector<128x32xf32>
    %25 = arith.addf %23, %24 : vector<128x32xf32>
    %26 = arith.truncf %25 : vector<128x32xf32> to vector<128x32xbf16>
    %c0_10 = arith.constant 0 : index
    %c0_11 = arith.constant 0 : index
    %27 = vector.load %arg5[%c0_10, %c0_11] : memref<32x96xbf16, #tpu.memory_space<vmem>>, vector<32x96xbf16>
    %cst_12 = arith.constant dense<0.000000e+00> : vector<128x96xf32>
    %28 = tpu.matmul %26, %27, %cst_12 {dimension_numbers = #tpu.dot_dimension_numbers<[1], [0], [0], [1], [0, 0, 1, 1], [], []>} : vector<128x32xbf16>, vector<32x96xbf16>, vector<128x96xf32> -> vector<128x96xf32>
    %c0_13 = arith.constant 0 : index
    %c0_14 = arith.constant 0 : index
    %29 = vector.load %arg6[%c0_13, %c0_14] : memref<1x96xf32, #tpu.memory_space<vmem>>, vector<1x96xf32>
    %30 = vector.broadcast %29 : vector<1x96xf32> to vector<128x96xf32>
    %31 = arith.addf %28, %30 : vector<128x96xf32>
    %32 = vector.extract_strided_slice %31 {offsets = [0, 0], sizes = [128, 32], strides = [1, 1]} : vector<128x96xf32> to vector<128x32xf32>
    %cst_15 = arith.constant 0.353553385 : f32
    %33 = vector.broadcast %cst_15 : f32 to vector<128x32xf32>
    %34 = arith.mulf %32, %33 : vector<128x32xf32>
    %35 = arith.truncf %34 : vector<128x32xf32> to vector<128x32xbf16>
    %c0_16 = arith.constant 0 : index
    %c0_17 = arith.constant 0 : index
    %c0_18 = arith.constant 0 : index
    %36 = vector.load %arg7[%c0_16, %c0_17, %c0_18] : memref<1x128x32xbf16, #tpu.memory_space<vmem>>, vector<1x128x32xbf16>
    %37 = vector.shape_cast %36 : vector<1x128x32xbf16> to vector<128x32xbf16>
    %38 = vector.shape_cast %35 : vector<128x32xbf16> to vector<1x128x32xbf16>
    tpu.vector_store %arg7[%c0_16, %c0_17, %c0_18], %38 {strides = array<i32>} : memref<1x128x32xbf16, #tpu.memory_space<vmem>>, vector<1x128x32xbf16>,
    %39 = vector.extract_strided_slice %31 {offsets = [0, 32], sizes = [128, 32], strides = [1, 1]} : vector<128x96xf32> to vector<128x32xf32>
    %40 = arith.truncf %39 : vector<128x32xf32> to vector<128x32xbf16>
    %c0_19 = arith.constant 0 : index
    %c0_20 = arith.constant 0 : index
    %c0_21 = arith.constant 0 : index
    %41 = vector.load %arg8[%c0_19, %c0_20, %c0_21] : memref<1x128x32xbf16, #tpu.memory_space<vmem>>, vector<1x128x32xbf16>
    %42 = vector.shape_cast %41 : vector<1x128x32xbf16> to vector<128x32xbf16>
    %43 = vector.shape_cast %40 : vector<128x32xbf16> to vector<1x128x32xbf16>
    tpu.vector_store %arg8[%c0_19, %c0_20, %c0_21], %43 {strides = array<i32>} : memref<1x128x32xbf16, #tpu.memory_space<vmem>>, vector<1x128x32xbf16>,
    %44 = vector.extract_strided_slice %31 {offsets = [0, 64], sizes = [128, 32], strides = [1, 1]} : vector<128x96xf32> to vector<128x32xf32>
    %45 = arith.truncf %44 : vector<128x32xf32> to vector<128x32xbf16>
    %c0_22 = arith.constant 0 : index
    %c0_23 = arith.constant 0 : index
    %c0_24 = arith.constant 0 : index
    %46 = vector.load %arg9[%c0_22, %c0_23, %c0_24] : memref<1x128x32xbf16, #tpu.memory_space<vmem>>, vector<1x128x32xbf16>
    %47 = vector.shape_cast %46 : vector<1x128x32xbf16> to vector<128x32xbf16>
    %48 = vector.shape_cast %45 : vector<128x32xbf16> to vector<1x128x32xbf16>
    tpu.vector_store %arg9[%c0_22, %c0_23, %c0_24], %48 {strides = array<i32>} : memref<1x128x32xbf16, #tpu.memory_space<vmem>>, vector<1x128x32xbf16>,
    return
  }
  func.func @transform_0(%arg0: i32, %arg1: i32) -> (i32, i32, i32) {
    %c0_i32 = arith.constant 0 : i32
    %c0_i32_0 = arith.constant 0 : i32
    return %arg0, %arg1, %c0_i32 : i32, i32, i32
  }
  func.func @transform_1(%arg0: i32, %arg1: i32) -> (i32, i32) {
    %c0_i32 = arith.constant 0 : i32
    %c0_i32_0 = arith.constant 0 : i32
    %c0_i32_1 = arith.constant 0 : i32
    return %c0_i32, %c0_i32_0 : i32, i32
  }
  func.func @transform_2(%arg0: i32, %arg1: i32) -> (i32, i32) {
    %c0_i32 = arith.constant 0 : i32
    %c0_i32_0 = arith.constant 0 : i32
    %c0_i32_1 = arith.constant 0 : i32
    return %c0_i32, %c0_i32_0 : i32, i32
  }
  func.func @transform_3(%arg0: i32, %arg1: i32) -> (i32, i32) {
    %c0_i32 = arith.constant 0 : i32
    %c0_i32_0 = arith.constant 0 : i32
    %c0_i32_1 = arith.constant 0 : i32
    return %c0_i32, %c0_i32_0 : i32, i32
  }
  func.func @transform_4(%arg0: i32, %arg1: i32) -> (i32, i32) {
    %c0_i32 = arith.constant 0 : i32
    %c0_i32_0 = arith.constant 0 : i32
    %c0_i32_1 = arith.constant 0 : i32
    return %c0_i32, %c0_i32_0 : i32, i32
  }
  func.func @transform_5(%arg0: i32, %arg1: i32) -> (i32, i32, i32) {
    %c0_i32 = arith.constant 0 : i32
    %c0_i32_0 = arith.constant 0 : i32
    return %arg0, %arg1, %c0_i32 : i32, i32, i32
  }
  func.func @transform_6(%arg0: i32, %arg1: i32) -> (i32, i32, i32) {
    %c0_i32 = arith.constant 0 : i32
    %c0_i32_0 = arith.constant 0 : i32
    return %arg0, %arg1, %c0_i32 : i32, i32, i32
  }
  func.func @transform_7(%arg0: i32, %arg1: i32) -> (i32, i32, i32) {
    %c0_i32 = arith.constant 0 : i32
    %c0_i32_0 = arith.constant 0 : i32
    return %arg0, %arg1, %c0_i32 : i32, i32, i32
  }
}

</mosaic_0001>

<llo_original>
// kernel: tpu_custom_call.1
$region0: #{tpu_custom_call.1}
  #allocation0 [shape = 'u32[]', space=smem, size = 0x4, offset = 0x4, fixed_abs, tag = 'smem constant byte address 0x4 - core index']
  #allocation1 [shape = 'u32[72,128]{1,0:T(1,128)}', space=vmem, size = 0x9000, scoped, tag = 'internal scratch']
  %s0 = inlined_call_operand.vmem [shape: f32[2,256,32], index: 0, kind: input, shape index: {}]
  %s1 = inlined_call_operand.vmem [shape: f32[1,32], index: 1, kind: input, shape index: {}]
  %s2 = inlined_call_operand.vmem [shape: f32[1,32], index: 2, kind: input, shape index: {}]
  %s3 = inlined_call_operand.vmem [shape: bf16[32,96], index: 3, kind: input, shape index: {}]
  %s4 = inlined_call_operand.vmem [shape: f32[1,96], index: 4, kind: input, shape index: {}]
  %s5 = inlined_call_operand.vmem [shape: bf16[2,256,32], index: 5, kind: output, shape index: {0}]
  %s6 = inlined_call_operand.vmem [shape: bf16[2,256,32], index: 6, kind: output, shape index: {1}]
  %s7 = inlined_call_operand.vmem [shape: bf16[2,256,32], index: 7, kind: output, shape index: {2}]
  %8 = xla_tuple %s5, %s6, %s7
  %s9 = sld [smem:[#allocation0]]
  $region69: #{tpu_custom_call.1} parent=0
    _
  %s11 = ssub.s32 1, %s9
  %s12 = scalar_select 0, %s11, %s9
  loop: start=0, step=1, limit=6
  $region2: #{tpu_custom_call.1} parent=0 // loop_pre_header
    _
  $region3: #{tpu_custom_call.1} parent=0 // loop_header
    %s14 = sphi 0, %s18
    %p15 = scmp.ge.s32.totalorder %s14, 6
    %s21 = sphi 0, %s33
    %s22 = sphi 0, %s29
    %s23 = sphi 0, %s21
    %s24 = sphi 0, %s22
    %s25 = sphi 0, %s23
    %s26 = sphi 0, %s24
    %s38 = sphi 0, %s40
    %s41 = sphi 0, %s38
    %s42 = sphi 0, %s41
    %s58 = sphi 0, %s42
    %s62 = sphi 0, %s62
    %s64 = sphi 0, %s62
    %s65 = sphi 0, %s64
    %s79 = sphi 0, %s65
    %s83 = sphi 0, %s83
    %s85 = sphi 0, %s83
    %s86 = sphi 0, %s85
    %s100 = sphi 0, %s86
    %s104 = sphi 0, %s104
    %s106 = sphi 0, %s104
    %s107 = sphi 0, %s106
    %s121 = sphi 0, %s107
    %s125 = sphi 0, %s125
    %s127 = sphi 0, %s125
    %s128 = sphi 0, %s127
    %s142 = sphi 0, %s128
    %s150 = sphi 0, %s152
    %s153 = sphi 0, %s150
    %s154 = sphi 0, %s153
    %s170 = sphi 0, %s154
    %s178 = sphi 0, %s180
    %s181 = sphi 0, %s178
    %s182 = sphi 0, %s181
    %s198 = sphi 0, %s182
    %s206 = sphi 0, %s208
    %s209 = sphi 0, %s206
    %s210 = sphi 0, %s209
    %s226 = sphi 0, %s210
  $region4: #{tpu_custom_call.1} parent=0 // loop_header_branch
    %17 = sbr.rel (%p15) target = $region8
  $region5: #{tpu_custom_call.1} parent=0 // loop_body
    %s19 = ssub.s32 %s14, 1
    %s20 = ssub.s32 %s14, 2
    %s27 = sadd.s32 1, %s22
    %p28 = scmp.ge.s32.totalorder %s27, 2
    %s29 = scalar_select %p28, 0, %s27
    %s30 = sadd.s32 1, %s21
    %s31 = scalar_select %p28, %s30, %s21
    %p32 = scmp.ge.s32.totalorder %s31, 2
    %s33 = scalar_select %p32, 0, %s31
    %s34 = ssub.s32 %s21, %s33
    %s35 = ssub.s32 %s22, %s29
    %s36 = sor.u32 %s34, %s35
    %p37 = scmp.eq.s32.totalorder %s36, 0
    %s39 = sadd.s32 %s38, 1
    %s40 = scalar_select %p37, %s38, %s39
    %p43 = pneg %p37
    %p44 = scmp.eq.s32.totalorder %s14, 3
    %p45 = por %p43, %p44
    %p46 = scmp.ne.s32.totalorder %s38, %s41
    %p47 = scmp.eq.s32.totalorder %s14, 0
    %p48 = por %p46, %p47
    %p49 = scmp.ne.s32.totalorder %s38, %s41
    %p50 = scmp.eq.s32.totalorder %s19, 3
    %p51 = por %p49, %p50
    %p52 = scmp.ne.s32.totalorder %s41, %s42
    %p53 = scmp.eq.s32.totalorder %s19, 0
    %p54 = por %p52, %p53
    %p55 = scmp.ne.s32.totalorder %s41, %s42
    %p56 = scmp.eq.s32.totalorder %s20, 3
    %p57 = por %p55, %p56
    %p59 = scmp.ne.s32.totalorder %s42, %s58
    %p60 = scmp.eq.s32.totalorder %s20, 0
    %p61 = por %p59, %p60
    %s63 = sadd.s32 %s62, 1
    %p66 = scmp.eq.s32.totalorder %s14, 3
    %p67 = scmp.ne.s32.totalorder %s62, %s64
    %p68 = scmp.eq.s32.totalorder %s14, 0
    %p69 = por %p67, %p68
    %p70 = scmp.ne.s32.totalorder %s62, %s64
    %p71 = scmp.eq.s32.totalorder %s19, 3
    %p72 = por %p70, %p71
    %p73 = scmp.ne.s32.totalorder %s64, %s65
    %p74 = scmp.eq.s32.totalorder %s19, 0
    %p75 = por %p73, %p74
    %p76 = scmp.ne.s32.totalorder %s64, %s65
    %p77 = scmp.eq.s32.totalorder %s20, 3
    %p78 = por %p76, %p77
    %p80 = scmp.ne.s32.totalorder %s65, %s79
    %p81 = scmp.eq.s32.totalorder %s20, 0
    %p82 = por %p80, %p81
    %s84 = sadd.s32 %s83, 1
    %p87 = scmp.eq.s32.totalorder %s14, 3
    %p88 = scmp.ne.s32.totalorder %s83, %s85
    %p89 = scmp.eq.s32.totalorder %s14, 0
    %p90 = por %p88, %p89
    %p91 = scmp.ne.s32.totalorder %s83, %s85
    %p92 = scmp.eq.s32.totalorder %s19, 3
    %p93 = por %p91, %p92
    %p94 = scmp.ne.s32.totalorder %s85, %s86
    %p95 = scmp.eq.s32.totalorder %s19, 0
    %p96 = por %p94, %p95
    %p97 = scmp.ne.s32.totalorder %s85, %s86
    %p98 = scmp.eq.s32.totalorder %s20, 3
    %p99 = por %p97, %p98
    %p101 = scmp.ne.s32.totalorder %s86, %s100
    %p102 = scmp.eq.s32.totalorder %s20, 0
    %p103 = por %p101, %p102
    %s105 = sadd.s32 %s104, 1
    %p108 = scmp.eq.s32.totalorder %s14, 3
    %p109 = scmp.ne.s32.totalorder %s104, %s106
    %p110 = scmp.eq.s32.totalorder %s14, 0
    %p111 = por %p109, %p110
    %p112 = scmp.ne.s32.totalorder %s104, %s106
    %p113 = scmp.eq.s32.totalorder %s19, 3
    %p114 = por %p112, %p113
    %p115 = scmp.ne.s32.totalorder %s106, %s107
    %p116 = scmp.eq.s32.totalorder %s19, 0
    %p117 = por %p115, %p116
    %p118 = scmp.ne.s32.totalorder %s106, %s107
    %p119 = scmp.eq.s32.totalorder %s20, 3
    %p120 = por %p118, %p119
    %p122 = scmp.ne.s32.totalorder %s107, %s121
    %p123 = scmp.eq.s32.totalorder %s20, 0
    %p124 = por %p122, %p123
    %s126 = sadd.s32 %s125, 1
    %p129 = scmp.eq.s32.totalorder %s14, 3
    %p130 = scmp.ne.s32.totalorder %s125, %s127
    %p131 = scmp.eq.s32.totalorder %s14, 0
    %p132 = por %p130, %p131
    %p133 = scmp.ne.s32.totalorder %s125, %s127
    %p134 = scmp.eq.s32.totalorder %s19, 3
    %p135 = por %p133, %p134
    %p136 = scmp.ne.s32.totalorder %s127, %s128
    %p137 = scmp.eq.s32.totalorder %s19, 0
    %p138 = por %p136, %p137
    %p139 = scmp.ne.s32.totalorder %s127, %s128
    %p140 = scmp.eq.s32.totalorder %s20, 3
    %p141 = por %p139, %p140
    %p143 = scmp.ne.s32.totalorder %s128, %s142
    %p144 = scmp.eq.s32.totalorder %s20, 0
    %p145 = por %p143, %p144
    %s146 = ssub.s32 %s21, %s33
    %s147 = ssub.s32 %s22, %s29
    %s148 = sor.u32 %s146, %s147
    %p149 = scmp.eq.s32.totalorder %s148, 0
    %s151 = sadd.s32 %s150, 1
    %s152 = scalar_select %p149, %s150, %s151
    %p155 = pneg %p149
    %p156 = scmp.eq.s32.totalorder %s14, 3
    %p157 = por %p155, %p156
    %p158 = scmp.ne.s32.totalorder %s150, %s153
    %p159 = scmp.eq.s32.totalorder %s14, 0
    %p160 = por %p158, %p159
    %p161 = scmp.ne.s32.totalorder %s150, %s153
    %p162 = scmp.eq.s32.totalorder %s19, 3
    %p163 = por %p161, %p162
    %p164 = scmp.ne.s32.totalorder %s153, %s154
    %p165 = scmp.eq.s32.totalorder %s19, 0
    %p166 = por %p164, %p165
    %p167 = scmp.ne.s32.totalorder %s153, %s154
    %p168 = scmp.eq.s32.totalorder %s20, 3
    %p169 = por %p167, %p168
    %p171 = scmp.ne.s32.totalorder %s154, %s170
    %p172 = scmp.eq.s32.totalorder %s20, 0
    %p173 = por %p171, %p172
    %s174 = ssub.s32 %s21, %s33
    %s175 = ssub.s32 %s22, %s29
    %s176 = sor.u32 %s174, %s175
    %p177 = scmp.eq.s32.totalorder %s176, 0
    %s179 = sadd.s32 %s178, 1
    %s180 = scalar_select %p177, %s178, %s179
    %p183 = pneg %p177
    %p184 = scmp.eq.s32.totalorder %s14, 3
    %p185 = por %p183, %p184
    %p186 = scmp.ne.s32.totalorder %s178, %s181
    %p187 = scmp.eq.s32.totalorder %s14, 0
    %p188 = por %p186, %p187
    %p189 = scmp.ne.s32.totalorder %s178, %s181
    %p190 = scmp.eq.s32.totalorder %s19, 3
    %p191 = por %p189, %p190
    %p192 = scmp.ne.s32.totalorder %s181, %s182
    %p193 = scmp.eq.s32.totalorder %s19, 0
    %p194 = por %p192, %p193
    %p195 = scmp.ne.s32.totalorder %s181, %s182
    %p196 = scmp.eq.s32.totalorder %s20, 3
    %p197 = por %p195, %p196
    %p199 = scmp.ne.s32.totalorder %s182, %s198
    %p200 = scmp.eq.s32.totalorder %s20, 0
    %p201 = por %p199, %p200
    %s202 = ssub.s32 %s21, %s33
    %s203 = ssub.s32 %s22, %s29
    %s204 = sor.u32 %s202, %s203
    %p205 = scmp.eq.s32.totalorder %s204, 0
    %s207 = sadd.s32 %s206, 1
    %s208 = scalar_select %p205, %s206, %s207
    %p211 = pneg %p205
    %p212 = scmp.eq.s32.totalorder %s14, 3
    %p213 = por %p211, %p212
    %p214 = scmp.ne.s32.totalorder %s206, %s209
    %p215 = scmp.eq.s32.totalorder %s14, 0
    %p216 = por %p214, %p215
    %p217 = scmp.ne.s32.totalorder %s206, %s209
    %p218 = scmp.eq.s32.totalorder %s19, 3
    %p219 = por %p217, %p218
    %p220 = scmp.ne.s32.totalorder %s209, %s210
    %p221 = scmp.eq.s32.totalorder %s19, 0
    %p222 = por %p220, %p221
    %p223 = scmp.ne.s32.totalorder %s209, %s210
    %p224 = scmp.eq.s32.totalorder %s20, 3
    %p225 = por %p223, %p224
    %p227 = scmp.ne.s32.totalorder %s210, %s226
    %p228 = scmp.eq.s32.totalorder %s20, 0
    %p229 = por %p227, %p228
    %p230 = scmp.le.s32.totalorder 1, %s14
    %p231 = scmp.lt.s32.totalorder %s14, 5
    %p232 = pnand %p230, %p231
    %p233 = pneg %p232
    // Predicated region
    $region9: #{tpu_custom_call.1} parent=5 // pred_check
      _
    $region10: #{tpu_custom_call.1} parent=5 // pred_check_branch
      %235 = sbr.rel (%p232) target = $region12
    $region11: #{tpu_custom_call.1} parent=5 // pred_region
      %s236 = ssub.s32 %s14, 1
      // Predicated region
      $region13: #{tpu_custom_call.1} parent=11 // pred_check
        %p237 = pneg %p75
      $region14: #{tpu_custom_call.1} parent=11 // pred_check_branch
        %239 = sbr.rel (%p237) target = $region16
      $region15: #{tpu_custom_call.1} parent=11 // pred_region
        _
      $region16: #{tpu_custom_call.1} parent=11 // pred_fallthru
        _
      // Predicated region
      $region17: #{tpu_custom_call.1} parent=11 // pred_check
        %p240 = pneg %p96
      $region18: #{tpu_custom_call.1} parent=11 // pred_check_branch
        %242 = sbr.rel (%p240) target = $region20
      $region19: #{tpu_custom_call.1} parent=11 // pred_region
        _
      $region20: #{tpu_custom_call.1} parent=11 // pred_fallthru
        _
      // Predicated region
      $region21: #{tpu_custom_call.1} parent=11 // pred_check
        %p243 = pneg %p117
      $region22: #{tpu_custom_call.1} parent=11 // pred_check_branch
        %245 = sbr.rel (%p243) target = $region24
      $region23: #{tpu_custom_call.1} parent=11 // pred_region
        _
      $region24: #{tpu_custom_call.1} parent=11 // pred_fallthru
        _
      // Predicated region
      $region25: #{tpu_custom_call.1} parent=11 // pred_check
        %p246 = pneg %p138
      $region26: #{tpu_custom_call.1} parent=11 // pred_check_branch
        %248 = sbr.rel (%p246) target = $region28
      $region27: #{tpu_custom_call.1} parent=11 // pred_region
        _
      $region28: #{tpu_custom_call.1} parent=11 // pred_fallthru
        _
    $region12: #{tpu_custom_call.1} parent=5 // pred_fallthru
      _
    %p249 = scmp.lt.s32.totalorder %s14, 4
    // Predicated region
    $region29: #{tpu_custom_call.1} parent=5 // pred_check
      %p250 = pneg %p249
    $region30: #{tpu_custom_call.1} parent=5 // pred_check_branch
      %252 = sbr.rel (%p250) target = $region32
    $region31: #{tpu_custom_call.1} parent=5 // pred_region
      // Predicated region
      $region33: #{tpu_custom_call.1} parent=31 // pred_check
        %p253 = pneg %p48
      $region34: #{tpu_custom_call.1} parent=31 // pred_check_branch
        %255 = sbr.rel (%p253) target = $region36
      $region35: #{tpu_custom_call.1} parent=31 // pred_region
        %s256 = smul.u32 16, %s22
        %p257 = scmp.lt.s32.totalorder %s21, 1
        %s258 = scalar_select %p257, %s21, 1
        %p259 = scmp.lt.s32.totalorder %s256, 31
        %s260 = scalar_select %p259, %s256, 31
        %s261 = smul.addr %s258, 32
        %s262 = sadd.s32 %s260, %s261
        %s263 = smul.addr %s262, 8
        %s264 = scalar_lea.vmem %s0, %s263
        %s265 = smul.u32 16, %s22
      $region36: #{tpu_custom_call.1} parent=31 // pred_fallthru
        _
    $region32: #{tpu_custom_call.1} parent=5 // pred_fallthru
      _
    %p266 = scmp.le.s32.totalorder 1, %s14
    %p267 = scmp.lt.s32.totalorder %s14, 5
    %p268 = pnand %p266, %p267
    %p269 = pneg %p268
    // Predicated region
    $region37: #{tpu_custom_call.1} parent=5 // pred_check
      _
    $region38: #{tpu_custom_call.1} parent=5 // pred_check_branch
      %271 = sbr.rel (%p268) target = $region40
    $region39: #{tpu_custom_call.1} parent=5 // pred_region
      %s272 = ssub.s32 %s14, 1
      %s273 = smul.u32 16, %s24
      %p274 = scmp.lt.s32.totalorder %s23, 1
      %s275 = scalar_select %p274, %s23, 1
      %p276 = scmp.lt.s32.totalorder %s273, 31
      %s277 = scalar_select %p276, %s273, 31
      %s278 = smul.addr %s275, 32
      %s279 = sadd.s32 %s277, %s278
      %s280 = smul.addr %s279, 8
      %s281 = scalar_lea.vmem %s0, %s280
      %p282 = pneg %p54
      %p283 = pneg %p51
      %p284 = pneg %p75
      %p285 = pneg %p72
      %p286 = pneg %p96
      %p287 = pneg %p93
      %p288 = pneg %p117
      %p289 = pneg %p114
      %p290 = pneg %p138
      %p291 = pneg %p135
      %p292 = pneg %p166
      %p293 = pneg %p163
      %s294 = smul.u32 16, %s24
      %p295 = scmp.lt.s32.totalorder %s23, 1
      %s296 = scalar_select %p295, %s23, 1
      %p297 = scmp.lt.s32.totalorder %s294, 31
      %s298 = scalar_select %p297, %s294, 31
      %s299 = smul.addr %s296, 32
      %s300 = sadd.s32 %s298, %s299
      %s301 = smul.addr %s300, 4
      %s302 = scalar_lea.vmem %s5, %s301
      %p303 = pneg %p194
      %p304 = pneg %p191
      %s305 = smul.u32 16, %s24
      %p306 = scmp.lt.s32.totalorder %s23, 1
      %s307 = scalar_select %p306, %s23, 1
      %p308 = scmp.lt.s32.totalorder %s305, 31
      %s309 = scalar_select %p308, %s305, 31
      %s310 = smul.addr %s307, 32
      %s311 = sadd.s32 %s309, %s310
      %s312 = smul.addr %s311, 4
      %s313 = scalar_lea.vmem %s6, %s312
      %p314 = pneg %p222
      %p315 = pneg %p219
      %s316 = smul.u32 16, %s24
      %p317 = scmp.lt.s32.totalorder %s23, 1
      %s318 = scalar_select %p317, %s23, 1
      %p319 = scmp.lt.s32.totalorder %s316, 31
      %s320 = scalar_select %p319, %s316, 31
      %s321 = smul.addr %s318, 32
      %s322 = sadd.s32 %s320, %s321
      %s323 = smul.addr %s322, 4
      %s324 = scalar_lea.vmem %s7, %s323
      %s325 = smul.u32 16, %s24
      %p326 = scmp.lt.s32.totalorder %s23, 1
      %s327 = scalar_select %p326, %s23, 1
      %p328 = scmp.lt.s32.totalorder %s325, 31
      %s329 = scalar_select %p328, %s325, 31
      %s330 = smul.addr %s327, 32
      %s331 = sadd.s32 %s329, %s330
      %s332 = smul.addr %s331, 8
      %s333 = scalar_lea.vmem %s0, %s332
      %s334 = smul.u32 16, %s24
      %s335 = smul.u32 16, %s24
      %p336 = scmp.lt.s32.totalorder %s23, 1
      %s337 = scalar_select %p336, %s23, 1
      %p338 = scmp.lt.s32.totalorder %s335, 31
      %s339 = scalar_select %p338, %s335, 31
      %s340 = smul.addr %s337, 32
      %s341 = sadd.s32 %s339, %s340
      %s342 = smul.addr %s341, 4
      %s343 = scalar_lea.vmem %s5, %s342
      %s344 = smul.u32 16, %s24
      %s345 = smul.u32 16, %s24
      %p346 = scmp.lt.s32.totalorder %s23, 1
      %s347 = scalar_select %p346, %s23, 1
      %p348 = scmp.lt.s32.totalorder %s345, 31
      %s349 = scalar_select %p348, %s345, 31
      %s350 = smul.addr %s347, 32
      %s351 = sadd.s32 %s349, %s350
      %s352 = smul.addr %s351, 4
      %s353 = scalar_lea.vmem %s6, %s352
      %s354 = smul.u32 16, %s24
      %s355 = smul.u32 16, %s24
      %p356 = scmp.lt.s32.totalorder %s23, 1
      %s357 = scalar_select %p356, %s23, 1
      %p358 = scmp.lt.s32.totalorder %s355, 31
      %s359 = scalar_select %p358, %s355, 31
      %s360 = smul.addr %s357, 32
      %s361 = sadd.s32 %s359, %s360
      %s362 = smul.addr %s361, 4
      %s363 = scalar_lea.vmem %s7, %s362
      %s364 = smul.u32 16, %s24
      %v366 = vld [vmem:[%s333] sm:$0xff]
      %v367 = vld [vmem:[%s333 + $0x8] sm:$0xff]
      %v368 = vld [vmem:[%s333 + $0x10] sm:$0xff]
      %v369 = vld [vmem:[%s333 + $0x18] sm:$0xff]
      %v370 = vld [vmem:[%s333 + $0x20] sm:$0xff]
      %v371 = vld [vmem:[%s333 + $0x28] sm:$0xff]
      %v372 = vld [vmem:[%s333 + $0x30] sm:$0xff]
      %v373 = vld [vmem:[%s333 + $0x38] sm:$0xff]
      %v374 = vld [vmem:[%s333 + $0x40] sm:$0xff]
      %v375 = vld [vmem:[%s333 + $0x48] sm:$0xff]
      %v376 = vld [vmem:[%s333 + $0x50] sm:$0xff]
      %v377 = vld [vmem:[%s333 + $0x58] sm:$0xff]
      %v378 = vld [vmem:[%s333 + $0x60] sm:$0xff]
      %v379 = vld [vmem:[%s333 + $0x68] sm:$0xff]
      %v380 = vld [vmem:[%s333 + $0x70] sm:$0xff]
      %v381 = vld [vmem:[%s333 + $0x78] sm:$0xff]
      %v382 = vld [vmem:[%s1] sm:$0x1]
      %v383 = vld [vmem:[%s2] sm:$0x1]
      %vm384 = vcmask 261120
      %v385 = vsel %vm384, %v366, 0.0
      %386 = vadd.xlane.f32.xlu0 %v385
      %v387 = vpop.xlane.xlu0 %386
      %v388 = vsel %vm384, %v367, 0.0
      %389 = vadd.xlane.f32.xlu0 %v388
      %v390 = vpop.xlane.xlu0 %389
      %v391 = vsel %vm384, %v368, 0.0
      %392 = vadd.xlane.f32.xlu0 %v391
      %v393 = vpop.xlane.xlu0 %392
      %v394 = vsel %vm384, %v369, 0.0
      %395 = vadd.xlane.f32.xlu0 %v394
      %v396 = vpop.xlane.xlu0 %395
      %v397 = vsel %vm384, %v370, 0.0
      %398 = vadd.xlane.f32.xlu0 %v397
      %v399 = vpop.xlane.xlu0 %398
      %v400 = vsel %vm384, %v371, 0.0
      %401 = vadd.xlane.f32.xlu0 %v400
      %v402 = vpop.xlane.xlu0 %401
      %v403 = vsel %vm384, %v372, 0.0
      %404 = vadd.xlane.f32.xlu0 %v403
      %v405 = vpop.xlane.xlu0 %404
      %v406 = vsel %vm384, %v373, 0.0
      %407 = vadd.xlane.f32.xlu0 %v406
      %v408 = vpop.xlane.xlu0 %407
      %v409 = vsel %vm384, %v374, 0.0
      %410 = vadd.xlane.f32.xlu0 %v409
      %v411 = vpop.xlane.xlu0 %410
      %v412 = vsel %vm384, %v375, 0.0
      %413 = vadd.xlane.f32.xlu0 %v412
      %v414 = vpop.xlane.xlu0 %413
      %v415 = vsel %vm384, %v376, 0.0
      %416 = vadd.xlane.f32.xlu0 %v415
      %v417 = vpop.xlane.xlu0 %416
      %v418 = vsel %vm384, %v377, 0.0
      %419 = vadd.xlane.f32.xlu0 %v418
      %v420 = vpop.xlane.xlu0 %419
      %v421 = vsel %vm384, %v378, 0.0
      %422 = vadd.xlane.f32.xlu0 %v421
      %v423 = vpop.xlane.xlu0 %422
      %v424 = vsel %vm384, %v379, 0.0
      %425 = vadd.xlane.f32.xlu0 %v424
      %v426 = vpop.xlane.xlu0 %425
      %v427 = vsel %vm384, %v380, 0.0
      %428 = vadd.xlane.f32.xlu0 %v427
      %v429 = vpop.xlane.xlu0 %428
      %v430 = vsel %vm384, %v381, 0.0
      %431 = vadd.xlane.f32.xlu0 %v430
      %v432 = vpop.xlane.xlu0 %431
      %v433 = vrcp.pop 32.0
      %v434 = vmul.f32 32.0, %v433
      %v435 = vsub.f32 1.0, %v434
      %v436 = vmul.f32 %v433, %v435
      %v437 = vadd.f32 %v433, %v436
      %vm438 = vweird.f32 %v433
      %v439 = vsel %vm438, %v433, %v437
      %v440 = vmul.f32 %v387, %v439
      %v441 = vmul.f32 %v390, %v439
      %v442 = vmul.f32 %v393, %v439
      %v443 = vmul.f32 %v396, %v439
      %v444 = vmul.f32 %v399, %v439
      %v445 = vmul.f32 %v402, %v439
      %v446 = vmul.f32 %v405, %v439
      %v447 = vmul.f32 %v408, %v439
      %v448 = vmul.f32 %v411, %v439
      %v449 = vmul.f32 %v414, %v439
      %v450 = vmul.f32 %v417, %v439
      %v451 = vmul.f32 %v420, %v439
      %v452 = vmul.f32 %v423, %v439
      %v453 = vmul.f32 %v426, %v439
      %v454 = vmul.f32 %v429, %v439
      %v455 = vmul.f32 %v432, %v439
      %v456 = vsub.f32 %v366, %v440
      %v457 = vsub.f32 %v367, %v441
      %v458 = vsub.f32 %v368, %v442
      %v459 = vsub.f32 %v369, %v443
      %v460 = vsub.f32 %v370, %v444
      %v461 = vsub.f32 %v371, %v445
      %v462 = vsub.f32 %v372, %v446
      %v463 = vsub.f32 %v373, %v447
      %v464 = vsub.f32 %v374, %v448
      %v465 = vsub.f32 %v375, %v449
      %v466 = vsub.f32 %v376, %v450
      %v467 = vsub.f32 %v377, %v451
      %v468 = vsub.f32 %v378, %v452
      %v469 = vsub.f32 %v379, %v453
      %v470 = vsub.f32 %v380, %v454
      %v471 = vsub.f32 %v381, %v455
      %v472 = vmul.f32 %v456, %v456
      %v473 = vmul.f32 %v457, %v457
      %v474 = vmul.f32 %v458, %v458
      %v475 = vmul.f32 %v459, %v459
      %v476 = vmul.f32 %v460, %v460
      %v477 = vmul.f32 %v461, %v461
      %v478 = vmul.f32 %v462, %v462
      %v479 = vmul.f32 %v463, %v463
      %v480 = vmul.f32 %v464, %v464
      %v481 = vmul.f32 %v465, %v465
      %v482 = vmul.f32 %v466, %v466
      %v483 = vmul.f32 %v467, %v467
      %v484 = vmul.f32 %v468, %v468
      %v485 = vmul.f32 %v469, %v469
      %v486 = vmul.f32 %v470, %v470
      %v487 = vmul.f32 %v471, %v471
      %v488 = vsel %vm384, %v472, 0.0
      %489 = vadd.xlane.f32.xlu0 %v488
      %v490 = vpop.xlane.xlu0 %489
      %v491 = vsel %vm384, %v473, 0.0
      %492 = vadd.xlane.f32.xlu0 %v491
      %v493 = vpop.xlane.xlu0 %492
      %v494 = vsel %vm384, %v474, 0.0
      %495 = vadd.xlane.f32.xlu0 %v494
      %v496 = vpop.xlane.xlu0 %495
      %v497 = vsel %vm384, %v475, 0.0
      %498 = vadd.xlane.f32.xlu0 %v497
      %v499 = vpop.xlane.xlu0 %498
      %v500 = vsel %vm384, %v476, 0.0
      %501 = vadd.xlane.f32.xlu0 %v500
      %v502 = vpop.xlane.xlu0 %501
      %v503 = vsel %vm384, %v477, 0.0
      %504 = vadd.xlane.f32.xlu0 %v503
      %v505 = vpop.xlane.xlu0 %504
      %v506 = vsel %vm384, %v478, 0.0
      %507 = vadd.xlane.f32.xlu0 %v506
      %v508 = vpop.xlane.xlu0 %507
      %v509 = vsel %vm384, %v479, 0.0
      %510 = vadd.xlane.f32.xlu0 %v509
      %v511 = vpop.xlane.xlu0 %510
      %v512 = vsel %vm384, %v480, 0.0
      %513 = vadd.xlane.f32.xlu0 %v512
      %v514 = vpop.xlane.xlu0 %513
      %v515 = vsel %vm384, %v481, 0.0
      %516 = vadd.xlane.f32.xlu0 %v515
      %v517 = vpop.xlane.xlu0 %516
      %v518 = vsel %vm384, %v482, 0.0
      %519 = vadd.xlane.f32.xlu0 %v518
      %v520 = vpop.xlane.xlu0 %519
      %v521 = vsel %vm384, %v483, 0.0
      %522 = vadd.xlane.f32.xlu0 %v521
      %v523 = vpop.xlane.xlu0 %522
      %v524 = vsel %vm384, %v484, 0.0
      %525 = vadd.xlane.f32.xlu0 %v524
      %v526 = vpop.xlane.xlu0 %525
      %v527 = vsel %vm384, %v485, 0.0
      %528 = vadd.xlane.f32.xlu0 %v527
      %v529 = vpop.xlane.xlu0 %528
      %v530 = vsel %vm384, %v486, 0.0
      %531 = vadd.xlane.f32.xlu0 %v530
      %v532 = vpop.xlane.xlu0 %531
      %v533 = vsel %vm384, %v487, 0.0
      %534 = vadd.xlane.f32.xlu0 %v533
      %v535 = vpop.xlane.xlu0 %534
      %v536 = vmul.f32 %v490, %v439
      %v537 = vmul.f32 %v493, %v439
      %v538 = vmul.f32 %v496, %v439
      %v539 = vmul.f32 %v499, %v439
      %v540 = vmul.f32 %v502, %v439
      %v541 = vmul.f32 %v505, %v439
      %v542 = vmul.f32 %v508, %v439
      %v543 = vmul.f32 %v511, %v439
      %v544 = vmul.f32 %v514, %v439
      %v545 = vmul.f32 %v517, %v439
      %v546 = vmul.f32 %v520, %v439
      %v547 = vmul.f32 %v523, %v439
      %v548 = vmul.f32 %v526, %v439
      %v549 = vmul.f32 %v529, %v439
      %v550 = vmul.f32 %v532, %v439
      %v551 = vmul.f32 %v535, %v439
      %v552 = vadd.f32 %v536, 1e-05
      %v553 = vadd.f32 %v537, 1e-05
      %v554 = vadd.f32 %v538, 1e-05
      %v555 = vadd.f32 %v539, 1e-05
      %v556 = vadd.f32 %v540, 1e-05
      %v557 = vadd.f32 %v541, 1e-05
      %v558 = vadd.f32 %v542, 1e-05
      %v559 = vadd.f32 %v543, 1e-05
      %v560 = vadd.f32 %v544, 1e-05
      %v561 = vadd.f32 %v545, 1e-05
      %v562 = vadd.f32 %v546, 1e-05
      %v563 = vadd.f32 %v547, 1e-05
      %v564 = vadd.f32 %v548, 1e-05
      %v565 = vadd.f32 %v549, 1e-05
      %v566 = vadd.f32 %v550, 1e-05
      %v567 = vadd.f32 %v551, 1e-05
      %v568 = vrsqrt.pop %v552
      %v569 = vmul.f32 %v568, %v552
      %v570 = vmul.f32 %v569, %v568
      %v571 = vmul.f32 0.5, %v570
      %v572 = vsub.f32 1.5, %v571
      %v573 = vmul.f32 %v568, %v572
      %vm574 = vweird.f32 %v552
      %vm575 = vweird.f32 %v568
      %vm576 = vmor %vm574, %vm575
      %v577 = vsel %vm576, %v568, %v573
      %v578 = vrsqrt.pop %v553
      %v579 = vmul.f32 %v578, %v553
      %v580 = vmul.f32 %v579, %v578
      %v581 = vmul.f32 0.5, %v580
      %v582 = vsub.f32 1.5, %v581
      %v583 = vmul.f32 %v578, %v582
      %vm584 = vweird.f32 %v553
      %vm585 = vweird.f32 %v578
      %vm586 = vmor %vm584, %vm585
      %v587 = vsel %vm586, %v578, %v583
      %v588 = vrsqrt.pop %v554
      %v589 = vmul.f32 %v588, %v554
      %v590 = vmul.f32 %v589, %v588
      %v591 = vmul.f32 0.5, %v590
      %v592 = vsub.f32 1.5, %v591
      %v593 = vmul.f32 %v588, %v592
      %vm594 = vweird.f32 %v554
      %vm595 = vweird.f32 %v588
      %vm596 = vmor %vm594, %vm595
      %v597 = vsel %vm596, %v588, %v593
      %v598 = vrsqrt.pop %v555
      %v599 = vmul.f32 %v598, %v555
      %v600 = vmul.f32 %v599, %v598
      %v601 = vmul.f32 0.5, %v600
      %v602 = vsub.f32 1.5, %v601
      %v603 = vmul.f32 %v598, %v602
      %vm604 = vweird.f32 %v555
      %vm605 = vweird.f32 %v598
      %vm606 = vmor %vm604, %vm605
      %v607 = vsel %vm606, %v598, %v603
      %v608 = vrsqrt.pop %v556
      %v609 = vmul.f32 %v608, %v556
      %v610 = vmul.f32 %v609, %v608
      %v611 = vmul.f32 0.5, %v610
      %v612 = vsub.f32 1.5, %v611
      %v613 = vmul.f32 %v608, %v612
      %vm614 = vweird.f32 %v556
      %vm615 = vweird.f32 %v608
      %vm616 = vmor %vm614, %vm615
      %v617 = vsel %vm616, %v608, %v613
      %v618 = vrsqrt.pop %v557
      %v619 = vmul.f32 %v618, %v557
      %v620 = vmul.f32 %v619, %v618
      %v621 = vmul.f32 0.5, %v620
      %v622 = vsub.f32 1.5, %v621
      %v623 = vmul.f32 %v618, %v622
      %vm624 = vweird.f32 %v557
      %vm625 = vweird.f32 %v618
      %vm626 = vmor %vm624, %vm625
      %v627 = vsel %vm626, %v618, %v623
      %v628 = vrsqrt.pop %v558
      %v629 = vmul.f32 %v628, %v558
      %v630 = vmul.f32 %v629, %v628
      %v631 = vmul.f32 0.5, %v630
      %v632 = vsub.f32 1.5, %v631
      %v633 = vmul.f32 %v628, %v632
      %vm634 = vweird.f32 %v558
      %vm635 = vweird.f32 %v628
      %vm636 = vmor %vm634, %vm635
      %v637 = vsel %vm636, %v628, %v633
      %v638 = vrsqrt.pop %v559
      %v639 = vmul.f32 %v638, %v559
      %v640 = vmul.f32 %v639, %v638
      %v641 = vmul.f32 0.5, %v640
      %v642 = vsub.f32 1.5, %v641
      %v643 = vmul.f32 %v638, %v642
      %vm644 = vweird.f32 %v559
      %vm645 = vweird.f32 %v638
      %vm646 = vmor %vm644, %vm645
      %v647 = vsel %vm646, %v638, %v643
      %v648 = vrsqrt.pop %v560
      %v649 = vmul.f32 %v648, %v560
      %v650 = vmul.f32 %v649, %v648
      %v651 = vmul.f32 0.5, %v650
      %v652 = vsub.f32 1.5, %v651
      %v653 = vmul.f32 %v648, %v652
      %vm654 = vweird.f32 %v560
      %vm655 = vweird.f32 %v648
      %vm656 = vmor %vm654, %vm655
      %v657 = vsel %vm656, %v648, %v653
      %v658 = vrsqrt.pop %v561
      %v659 = vmul.f32 %v658, %v561
      %v660 = vmul.f32 %v659, %v658
      %v661 = vmul.f32 0.5, %v660
      %v662 = vsub.f32 1.5, %v661
      %v663 = vmul.f32 %v658, %v662
      %vm664 = vweird.f32 %v561
      %vm665 = vweird.f32 %v658
      %vm666 = vmor %vm664, %vm665
      %v667 = vsel %vm666, %v658, %v663
      %v668 = vrsqrt.pop %v562
      %v669 = vmul.f32 %v668, %v562
      %v670 = vmul.f32 %v669, %v668
      %v671 = vmul.f32 0.5, %v670
      %v672 = vsub.f32 1.5, %v671
      %v673 = vmul.f32 %v668, %v672
      %vm674 = vweird.f32 %v562
      %vm675 = vweird.f32 %v668
      %vm676 = vmor %vm674, %vm675
      %v677 = vsel %vm676, %v668, %v673
      %v678 = vrsqrt.pop %v563
      %v679 = vmul.f32 %v678, %v563
      %v680 = vmul.f32 %v679, %v678
      %v681 = vmul.f32 0.5, %v680
      %v682 = vsub.f32 1.5, %v681
      %v683 = vmul.f32 %v678, %v682
      %vm684 = vweird.f32 %v563
      %vm685 = vweird.f32 %v678
      %vm686 = vmor %vm684, %vm685
      %v687 = vsel %vm686, %v678, %v683
      %v688 = vrsqrt.pop %v564
      %v689 = vmul.f32 %v688, %v564
      %v690 = vmul.f32 %v689, %v688
      %v691 = vmul.f32 0.5, %v690
      %v692 = vsub.f32 1.5, %v691
      %v693 = vmul.f32 %v688, %v692
      %vm694 = vweird.f32 %v564
      %vm695 = vweird.f32 %v688
      %vm696 = vmor %vm694, %vm695
      %v697 = vsel %vm696, %v688, %v693
      %v698 = vrsqrt.pop %v565
      %v699 = vmul.f32 %v698, %v565
      %v700 = vmul.f32 %v699, %v698
      %v701 = vmul.f32 0.5, %v700
      %v702 = vsub.f32 1.5, %v701
      %v703 = vmul.f32 %v698, %v702
      %vm704 = vweird.f32 %v565
      %vm705 = vweird.f32 %v698
      %vm706 = vmor %vm704, %vm705
      %v707 = vsel %vm706, %v698, %v703
      %v708 = vrsqrt.pop %v566
      %v709 = vmul.f32 %v708, %v566
      %v710 = vmul.f32 %v709, %v708
      %v711 = vmul.f32 0.5, %v710
      %v712 = vsub.f32 1.5, %v711
      %v713 = vmul.f32 %v708, %v712
      %vm714 = vweird.f32 %v566
      %vm715 = vweird.f32 %v708
      %vm716 = vmor %vm714, %vm715
      %v717 = vsel %vm716, %v708, %v713
      %v718 = vrsqrt.pop %v567
      %v719 = vmul.f32 %v718, %v567
      %v720 = vmul.f32 %v719, %v718
      %v721 = vmul.f32 0.5, %v720
      %v722 = vsub.f32 1.5, %v721
      %v723 = vmul.f32 %v718, %v722
      %vm724 = vweird.f32 %v567
      %vm725 = vweird.f32 %v718
      %vm726 = vmor %vm724, %vm725
      %v727 = vsel %vm726, %v718, %v723
      %v728 = vmul.f32 %v456, %v577
      %v729 = vmul.f32 %v457, %v587
      %v730 = vmul.f32 %v458, %v597
      %v731 = vmul.f32 %v459, %v607
      %v732 = vmul.f32 %v460, %v617
      %v733 = vmul.f32 %v461, %v627
      %v734 = vmul.f32 %v462, %v637
      %v735 = vmul.f32 %v463, %v647
      %v736 = vmul.f32 %v464, %v657
      %v737 = vmul.f32 %v465, %v667
      %v738 = vmul.f32 %v466, %v677
      %v739 = vmul.f32 %v467, %v687
      %v740 = vmul.f32 %v468, %v697
      %v741 = vmul.f32 %v469, %v707
      %v742 = vmul.f32 %v470, %v717
      %v743 = vmul.f32 %v471, %v727
      %v745 = vperm.slane %v382, 0
      %v747 = vmul.f32 %v728, %v745
      %v748 = vmul.f32 %v729, %v745
      %v749 = vmul.f32 %v730, %v745
      %v750 = vmul.f32 %v731, %v745
      %v751 = vmul.f32 %v732, %v745
      %v752 = vmul.f32 %v733, %v745
      %v753 = vmul.f32 %v734, %v745
      %v754 = vmul.f32 %v735, %v745
      %v755 = vmul.f32 %v736, %v745
      %v756 = vmul.f32 %v737, %v745
      %v757 = vmul.f32 %v738, %v745
      %v758 = vmul.f32 %v739, %v745
      %v759 = vmul.f32 %v740, %v745
      %v760 = vmul.f32 %v741, %v745
      %v761 = vmul.f32 %v742, %v745
      %v762 = vmul.f32 %v743, %v745
      %v764 = vperm.slane %v383, 0
      %v766 = vadd.f32 %v747, %v764
      %v767 = vadd.f32 %v748, %v764
      %v768 = vadd.f32 %v749, %v764
      %v769 = vadd.f32 %v750, %v764
      %v770 = vadd.f32 %v751, %v764
      %v771 = vadd.f32 %v752, %v764
      %v772 = vadd.f32 %v753, %v764
      %v773 = vadd.f32 %v754, %v764
      %v774 = vadd.f32 %v755, %v764
      %v775 = vadd.f32 %v756, %v764
      %v776 = vadd.f32 %v757, %v764
      %v777 = vadd.f32 %v758, %v764
      %v778 = vadd.f32 %v759, %v764
      %v779 = vadd.f32 %v760, %v764
      %v780 = vadd.f32 %v761, %v764
      %v781 = vadd.f32 %v762, %v764
      %v782 = vpack.c.bf16 %v767, %v766
      %v783 = vpack.c.bf16 %v769, %v768
      %v784 = vpack.c.bf16 %v771, %v770
      %v785 = vpack.c.bf16 %v773, %v772
      %v786 = vpack.c.bf16 %v775, %v774
      %v787 = vpack.c.bf16 %v777, %v776
      %v788 = vpack.c.bf16 %v779, %v778
      %v789 = vpack.c.bf16 %v781, %v780
      %v790 = vld [vmem:[%s3] sm:$0xf]
      %v791 = vld [vmem:[%s3 + $0x4] sm:$0xf]
      %v792 = vld [vmem:[%s3 + $0x8] sm:$0xf]
      %v793 = vld [vmem:[%s3 + $0xc] sm:$0xf]
      %v794 = vld [vmem:[%s4] sm:$0x1]
      %v796 = vperm.slane %v794, 0
      %v802 = vunpack.c.l.b16 %v790
      %v803 = vunpack.c.l.b16 %v791
      %v804 = vunpack.c.l.b16 %v792
      %v805 = vunpack.c.l.b16 %v793
      %v806 = vpack.c.b16 %v803, %v802
      %v807 = vpack.c.b16 %v805, %v804
      %v811 = vsel %vm384, %v782, 0
      %v814 = vsel %vm384, %v783, 0
      %v817 = vsel %vm384, %v784, 0
      %v820 = vsel %vm384, %v785, 0
      %v823 = vsel %vm384, %v786, 0
      %v826 = vsel %vm384, %v787, 0
      %v829 = vsel %vm384, %v788, 0
      %v832 = vsel %vm384, %v789, 0
      %834 = vmatpush.bf16.msra.mxu0 0
      %835 = vmatpush.bf16.msra.mxu0 0
      %836 = vmatpush.bf16.msra.mxu0 0
      %837 = vmatpush.bf16.msra.mxu0 0
      %838 = vmatpush.bf16.msra.mxu0 0
      %839 = vmatpush.bf16.msra.mxu0 0
      %840 = vmatpush.bf16.msra.mxu0 %v807
      %841 = vmatpush.bf16.msra.mxu0 %v806
      %842 = vmatmul.bf16.gmra.mxu0 %v811
      %v843 = vpop.f32.mrf.mxu0
      %v844 = vadd.f32 %v796, %v843
      %v845 = vpop.f32.mrf.mxu0
      %v846 = vadd.f32 %v796, %v845
      %847 = vmatmul.bf16.gmra.mxu0 %v814
      %v848 = vpop.f32.mrf.mxu0
      %v849 = vadd.f32 %v796, %v848
      %v850 = vpop.f32.mrf.mxu0
      %v851 = vadd.f32 %v796, %v850
      %852 = vmatmul.bf16.gmra.mxu0 %v817
      %v853 = vpop.f32.mrf.mxu0
      %v854 = vadd.f32 %v796, %v853
      %v855 = vpop.f32.mrf.mxu0
      %v856 = vadd.f32 %v796, %v855
      %857 = vmatmul.bf16.gmra.mxu0 %v820
      %v858 = vpop.f32.mrf.mxu0
      %v859 = vadd.f32 %v796, %v858
      %v860 = vpop.f32.mrf.mxu0
      %v861 = vadd.f32 %v796, %v860
      %862 = vmatmul.bf16.gmra.mxu0 %v823
      %v863 = vpop.f32.mrf.mxu0
      %v864 = vadd.f32 %v796, %v863
      %v865 = vpop.f32.mrf.mxu0
      %v866 = vadd.f32 %v796, %v865
      %867 = vmatmul.bf16.gmra.mxu0 %v826
      %v868 = vpop.f32.mrf.mxu0
      %v869 = vadd.f32 %v796, %v868
      %v870 = vpop.f32.mrf.mxu0
      %v871 = vadd.f32 %v796, %v870
      %872 = vmatmul.bf16.gmra.mxu0 %v829
      %v873 = vpop.f32.mrf.mxu0
      %v874 = vadd.f32 %v796, %v873
      %v875 = vpop.f32.mrf.mxu0
      %v876 = vadd.f32 %v796, %v875
      %877 = vmatmul.bf16.gmra.mxu0 %v832
      %v878 = vpop.f32.mrf.mxu0
      %v879 = vadd.f32 %v796, %v878
      %v880 = vpop.f32.mrf.mxu0
      %v881 = vadd.f32 %v796, %v880
      %882 = vdwg.mxu0
      %v883 = vmul.f32 %v844, 0.35355338
      %v884 = vmul.f32 %v846, 0.35355338
      %v885 = vmul.f32 %v849, 0.35355338
      %v886 = vmul.f32 %v851, 0.35355338
      %v887 = vmul.f32 %v854, 0.35355338
      %v888 = vmul.f32 %v856, 0.35355338
      %v889 = vmul.f32 %v859, 0.35355338
      %v890 = vmul.f32 %v861, 0.35355338
      %v891 = vmul.f32 %v864, 0.35355338
      %v892 = vmul.f32 %v866, 0.35355338
      %v893 = vmul.f32 %v869, 0.35355338
      %v894 = vmul.f32 %v871, 0.35355338
      %v895 = vmul.f32 %v874, 0.35355338
      %v896 = vmul.f32 %v876, 0.35355338
      %v897 = vmul.f32 %v879, 0.35355338
      %v898 = vmul.f32 %v881, 0.35355338
      %v899 = vpack.c.bf16 %v883, %v883
      %v900 = vpack.c.bf16 %v884, %v884
      %v901 = vpack.c.bf16 %v885, %v885
      %v902 = vpack.c.bf16 %v886, %v886
      %v903 = vpack.c.bf16 %v887, %v887
      %v904 = vpack.c.bf16 %v888, %v888
      %v905 = vpack.c.bf16 %v889, %v889
      %v906 = vpack.c.bf16 %v890, %v890
      %v907 = vpack.c.bf16 %v891, %v891
      %v908 = vpack.c.bf16 %v892, %v892
      %v909 = vpack.c.bf16 %v893, %v893
      %v910 = vpack.c.bf16 %v894, %v894
      %v911 = vpack.c.bf16 %v895, %v895
      %v912 = vpack.c.bf16 %v896, %v896
      %v913 = vpack.c.bf16 %v897, %v897
      %v914 = vpack.c.bf16 %v898, %v898
      %vm915 = vcmask 257024
      %916 = vst.msk [vmem:[%s343] sm:$0xf] %vm915, %v899
      %917 = vst.msk [vmem:[%s343 + $0x4] sm:$0xf] %vm915, %v900
      %918 = vst.msk [vmem:[%s343 + $0x8] sm:$0xf] %vm915, %v901
      %919 = vst.msk [vmem:[%s343 + $0xc] sm:$0xf] %vm915, %v902
      %920 = vst.msk [vmem:[%s343 + $0x10] sm:$0xf] %vm915, %v903
      %921 = vst.msk [vmem:[%s343 + $0x14] sm:$0xf] %vm915, %v904
      %922 = vst.msk [vmem:[%s343 + $0x18] sm:$0xf] %vm915, %v905
      %923 = vst.msk [vmem:[%s343 + $0x1c] sm:$0xf] %vm915, %v906
      %924 = vst.msk [vmem:[%s343 + $0x20] sm:$0xf] %vm915, %v907
      %925 = vst.msk [vmem:[%s343 + $0x24] sm:$0xf] %vm915, %v908
      %926 = vst.msk [vmem:[%s343 + $0x28] sm:$0xf] %vm915, %v909
      %927 = vst.msk [vmem:[%s343 + $0x2c] sm:$0xf] %vm915, %v910
      %928 = vst.msk [vmem:[%s343 + $0x30] sm:$0xf] %vm915, %v911
      %929 = vst.msk [vmem:[%s343 + $0x34] sm:$0xf] %vm915, %v912
      %930 = vst.msk [vmem:[%s343 + $0x38] sm:$0xf] %vm915, %v913
      %931 = vst.msk [vmem:[%s343 + $0x3c] sm:$0xf] %vm915, %v914
      %v932 = vpack.c.bf16 %v844, %v844
      %v933 = vpack.c.bf16 %v846, %v846
      %v934 = vpack.c.bf16 %v849, %v849
      %v935 = vpack.c.bf16 %v851, %v851
      %v936 = vpack.c.bf16 %v854, %v854
      %v937 = vpack.c.bf16 %v856, %v856
      %v938 = vpack.c.bf16 %v859, %v859
      %v939 = vpack.c.bf16 %v861, %v861
      %v940 = vpack.c.bf16 %v864, %v864
      %v941 = vpack.c.bf16 %v866, %v866
      %v942 = vpack.c.bf16 %v869, %v869
      %v943 = vpack.c.bf16 %v871, %v871
      %v944 = vpack.c.bf16 %v874, %v874
      %v945 = vpack.c.bf16 %v876, %v876
      %v946 = vpack.c.bf16 %v879, %v879
      %v947 = vpack.c.bf16 %v881, %v881
      %964 = vrot.lane.b32.xlu0 %v932, 96
      %v965 = vpop.permute.xlu0 %964
      %966 = vrot.lane.b32.xlu0 %v933, 96
      %v967 = vpop.permute.xlu0 %966
      %968 = vrot.lane.b32.xlu0 %v934, 96
      %v969 = vpop.permute.xlu0 %968
      %970 = vrot.lane.b32.xlu0 %v935, 96
      %v971 = vpop.permute.xlu0 %970
      %972 = vrot.lane.b32.xlu0 %v936, 96
      %v973 = vpop.permute.xlu0 %972
      %974 = vrot.lane.b32.xlu0 %v937, 96
      %v975 = vpop.permute.xlu0 %974
      %976 = vrot.lane.b32.xlu0 %v938, 96
      %v977 = vpop.permute.xlu0 %976
      %978 = vrot.lane.b32.xlu0 %v939, 96
      %v979 = vpop.permute.xlu0 %978
      %980 = vrot.lane.b32.xlu0 %v940, 96
      %v981 = vpop.permute.xlu0 %980
      %982 = vrot.lane.b32.xlu0 %v941, 96
      %v983 = vpop.permute.xlu0 %982
      %984 = vrot.lane.b32.xlu0 %v942, 96
      %v985 = vpop.permute.xlu0 %984
      %986 = vrot.lane.b32.xlu0 %v943, 96
      %v987 = vpop.permute.xlu0 %986
      %988 = vrot.lane.b32.xlu0 %v944, 96
      %v989 = vpop.permute.xlu0 %988
      %990 = vrot.lane.b32.xlu0 %v945, 96
      %v991 = vpop.permute.xlu0 %990
      %992 = vrot.lane.b32.xlu0 %v946, 96
      %v993 = vpop.permute.xlu0 %992
      %994 = vrot.lane.b32.xlu0 %v947, 96
      %v995 = vpop.permute.xlu0 %994
      %1012 = vst.msk [vmem:[%s353] sm:$0xf] %vm915, %v965
      %1013 = vst.msk [vmem:[%s353 + $0x4] sm:$0xf] %vm915, %v967
      %1014 = vst.msk [vmem:[%s353 + $0x8] sm:$0xf] %vm915, %v969
      %1015 = vst.msk [vmem:[%s353 + $0xc] sm:$0xf] %vm915, %v971
      %1016 = vst.msk [vmem:[%s353 + $0x10] sm:$0xf] %vm915, %v973
      %1017 = vst.msk [vmem:[%s353 + $0x14] sm:$0xf] %vm915, %v975
      %1018 = vst.msk [vmem:[%s353 + $0x18] sm:$0xf] %vm915, %v977
      %1019 = vst.msk [vmem:[%s353 + $0x1c] sm:$0xf] %vm915, %v979
      %1020 = vst.msk [vmem:[%s353 + $0x20] sm:$0xf] %vm915, %v981
      %1021 = vst.msk [vmem:[%s353 + $0x24] sm:$0xf] %vm915, %v983
      %1022 = vst.msk [vmem:[%s353 + $0x28] sm:$0xf] %vm915, %v985
      %1023 = vst.msk [vmem:[%s353 + $0x2c] sm:$0xf] %vm915, %v987
      %1024 = vst.msk [vmem:[%s353 + $0x30] sm:$0xf] %vm915, %v989
      %1025 = vst.msk [vmem:[%s353 + $0x34] sm:$0xf] %vm915, %v991
      %1026 = vst.msk [vmem:[%s353 + $0x38] sm:$0xf] %vm915, %v993
      %1027 = vst.msk [vmem:[%s353 + $0x3c] sm:$0xf] %vm915, %v995
      %1028 = vrot.lane.b32.xlu0 %v932, 64
      %v1029 = vpop.permute.xlu0 %1028
      %1030 = vrot.lane.b32.xlu0 %v933, 64
      %v1031 = vpop.permute.xlu0 %1030
      %1032 = vrot.lane.b32.xlu0 %v934, 64
      %v1033 = vpop.permute.xlu0 %1032
      %1034 = vrot.lane.b32.xlu0 %v935, 64
      %v1035 = vpop.permute.xlu0 %1034
      %1036 = vrot.lane.b32.xlu0 %v936, 64
      %v1037 = vpop.permute.xlu0 %1036
      %1038 = vrot.lane.b32.xlu0 %v937, 64
      %v1039 = vpop.permute.xlu0 %1038
      %1040 = vrot.lane.b32.xlu0 %v938, 64
      %v1041 = vpop.permute.xlu0 %1040
      %1042 = vrot.lane.b32.xlu0 %v939, 64
      %v1043 = vpop.permute.xlu0 %1042
      %1044 = vrot.lane.b32.xlu0 %v940, 64
      %v1045 = vpop.permute.xlu0 %1044
      %1046 = vrot.lane.b32.xlu0 %v941, 64
      %v1047 = vpop.permute.xlu0 %1046
      %1048 = vrot.lane.b32.xlu0 %v942, 64
      %v1049 = vpop.permute.xlu0 %1048
      %1050 = vrot.lane.b32.xlu0 %v943, 64
      %v1051 = vpop.permute.xlu0 %1050
      %1052 = vrot.lane.b32.xlu0 %v944, 64
      %v1053 = vpop.permute.xlu0 %1052
      %1054 = vrot.lane.b32.xlu0 %v945, 64
      %v1055 = vpop.permute.xlu0 %1054
      %1056 = vrot.lane.b32.xlu0 %v946, 64
      %v1057 = vpop.permute.xlu0 %1056
      %1058 = vrot.lane.b32.xlu0 %v947, 64
      %v1059 = vpop.permute.xlu0 %1058
      %1076 = vst.msk [vmem:[%s363] sm:$0xf] %vm915, %v1029
      %1077 = vst.msk [vmem:[%s363 + $0x4] sm:$0xf] %vm915, %v1031
      %1078 = vst.msk [vmem:[%s363 + $0x8] sm:$0xf] %vm915, %v1033
      %1079 = vst.msk [vmem:[%s363 + $0xc] sm:$0xf] %vm915, %v1035
      %1080 = vst.msk [vmem:[%s363 + $0x10] sm:$0xf] %vm915, %v1037
      %1081 = vst.msk [vmem:[%s363 + $0x14] sm:$0xf] %vm915, %v1039
      %1082 = vst.msk [vmem:[%s363 + $0x18] sm:$0xf] %vm915, %v1041
      %1083 = vst.msk [vmem:[%s363 + $0x1c] sm:$0xf] %vm915, %v1043
      %1084 = vst.msk [vmem:[%s363 + $0x20] sm:$0xf] %vm915, %v1045
      %1085 = vst.msk [vmem:[%s363 + $0x24] sm:$0xf] %vm915, %v1047
      %1086 = vst.msk [vmem:[%s363 + $0x28] sm:$0xf] %vm915, %v1049
      %1087 = vst.msk [vmem:[%s363 + $0x2c] sm:$0xf] %vm915, %v1051
      %1088 = vst.msk [vmem:[%s363 + $0x30] sm:$0xf] %vm915, %v1053
      %1089 = vst.msk [vmem:[%s363 + $0x34] sm:$0xf] %vm915, %v1055
      %1090 = vst.msk [vmem:[%s363 + $0x38] sm:$0xf] %vm915, %v1057
      %1091 = vst.msk [vmem:[%s363 + $0x3c] sm:$0xf] %vm915, %v1059
      %s1092 = smul.u32 16, %s24
      %p1093 = scmp.lt.s32.totalorder %s23, 1
      %s1094 = scalar_select %p1093, %s23, 1
      %p1095 = scmp.lt.s32.totalorder %s1092, 31
      %s1096 = scalar_select %p1095, %s1092, 31
      %s1097 = smul.addr %s1094, 32
      %s1098 = sadd.s32 %s1096, %s1097
      %s1099 = smul.addr %s1098, 4
      %s1100 = scalar_lea.vmem %s5, %s1099
      %s1101 = smul.u32 16, %s24
      %p1102 = scmp.lt.s32.totalorder %s23, 1
      %s1103 = scalar_select %p1102, %s23, 1
      %p1104 = scmp.lt.s32.totalorder %s1101, 31
      %s1105 = scalar_select %p1104, %s1101, 31
      %s1106 = smul.addr %s1103, 32
      %s1107 = sadd.s32 %s1105, %s1106
      %s1108 = smul.addr %s1107, 4
      %s1109 = scalar_lea.vmem %s6, %s1108
      %s1110 = smul.u32 16, %s24
      %p1111 = scmp.lt.s32.totalorder %s23, 1
      %s1112 = scalar_select %p1111, %s23, 1
      %p1113 = scmp.lt.s32.totalorder %s1110, 31
      %s1114 = scalar_select %p1113, %s1110, 31
      %s1115 = smul.addr %s1112, 32
      %s1116 = sadd.s32 %s1114, %s1115
      %s1117 = smul.addr %s1116, 4
      %s1118 = scalar_lea.vmem %s7, %s1117
      // Predicated region
      $region41: #{tpu_custom_call.1} parent=39 // pred_check
        %p1119 = pneg %p163
      $region42: #{tpu_custom_call.1} parent=39 // pred_check_branch
        %1121 = sbr.rel (%p1119) target = $region44
      $region43: #{tpu_custom_call.1} parent=39 // pred_region
        %s1122 = smul.u32 16, %s24
      $region44: #{tpu_custom_call.1} parent=39 // pred_fallthru
        _
      // Predicated region
      $region45: #{tpu_custom_call.1} parent=39 // pred_check
        %p1123 = pneg %p191
      $region46: #{tpu_custom_call.1} parent=39 // pred_check_branch
        %1125 = sbr.rel (%p1123) target = $region48
      $region47: #{tpu_custom_call.1} parent=39 // pred_region
        %s1126 = smul.u32 16, %s24
      $region48: #{tpu_custom_call.1} parent=39 // pred_fallthru
        _
      // Predicated region
      $region49: #{tpu_custom_call.1} parent=39 // pred_check
        %p1127 = pneg %p219
      $region50: #{tpu_custom_call.1} parent=39 // pred_check_branch
        %1129 = sbr.rel (%p1127) target = $region52
      $region51: #{tpu_custom_call.1} parent=39 // pred_region
        %s1130 = smul.u32 16, %s24
      $region52: #{tpu_custom_call.1} parent=39 // pred_fallthru
        _
    $region40: #{tpu_custom_call.1} parent=5 // pred_fallthru
      _
    %p1131 = scmp.le.s32.totalorder 2, %s14
    // Predicated region
    $region53: #{tpu_custom_call.1} parent=5 // pred_check
      %p1132 = pneg %p1131
    $region54: #{tpu_custom_call.1} parent=5 // pred_check_branch
      %1134 = sbr.rel (%p1132) target = $region56
    $region55: #{tpu_custom_call.1} parent=5 // pred_region
      %s1135 = ssub.s32 %s14, 2
      // Predicated region
      $region57: #{tpu_custom_call.1} parent=55 // pred_check
        %p1136 = pneg %p169
      $region58: #{tpu_custom_call.1} parent=55 // pred_check_branch
        %1138 = sbr.rel (%p1136) target = $region60
      $region59: #{tpu_custom_call.1} parent=55 // pred_region
        %s1139 = smul.u32 16, %s26
        %p1140 = scmp.lt.s32.totalorder %s25, 1
        %s1141 = scalar_select %p1140, %s25, 1
        %p1142 = scmp.lt.s32.totalorder %s1139, 31
        %s1143 = scalar_select %p1142, %s1139, 31
        %s1144 = smul.addr %s1141, 32
        %s1145 = sadd.s32 %s1143, %s1144
        %s1146 = smul.addr %s1145, 4
        %s1147 = scalar_lea.vmem %s5, %s1146
      $region60: #{tpu_custom_call.1} parent=55 // pred_fallthru
        _
      // Predicated region
      $region61: #{tpu_custom_call.1} parent=55 // pred_check
        %p1148 = pneg %p197
      $region62: #{tpu_custom_call.1} parent=55 // pred_check_branch
        %1150 = sbr.rel (%p1148) target = $region64
      $region63: #{tpu_custom_call.1} parent=55 // pred_region
        %s1151 = smul.u32 16, %s26
        %p1152 = scmp.lt.s32.totalorder %s25, 1
        %s1153 = scalar_select %p1152, %s25, 1
        %p1154 = scmp.lt.s32.totalorder %s1151, 31
        %s1155 = scalar_select %p1154, %s1151, 31
        %s1156 = smul.addr %s1153, 32
        %s1157 = sadd.s32 %s1155, %s1156
        %s1158 = smul.addr %s1157, 4
        %s1159 = scalar_lea.vmem %s6, %s1158
      $region64: #{tpu_custom_call.1} parent=55 // pred_fallthru
        _
      // Predicated region
      $region65: #{tpu_custom_call.1} parent=55 // pred_check
        %p1160 = pneg %p225
      $region66: #{tpu_custom_call.1} parent=55 // pred_check_branch
        %1162 = sbr.rel (%p1160) target = $region68
      $region67: #{tpu_custom_call.1} parent=55 // pred_region
        %s1163 = smul.u32 16, %s26
        %p1164 = scmp.lt.s32.totalorder %s25, 1
        %s1165 = scalar_select %p1164, %s25, 1
        %p1166 = scmp.lt.s32.totalorder %s1163, 31
        %s1167 = scalar_select %p1166, %s1163, 31
        %s1168 = smul.addr %s1165, 32
        %s1169 = sadd.s32 %s1167, %s1168
        %s1170 = smul.addr %s1169, 4
        %s1171 = scalar_lea.vmem %s7, %s1170
      $region68: #{tpu_custom_call.1} parent=55 // pred_fallthru
        _
    $region56: #{tpu_custom_call.1} parent=5 // pred_fallthru
      _
  $region6: #{tpu_custom_call.1} parent=0 // loop_footer
    %s18 = sadd.s32 1, %s14
  $region7: #{tpu_custom_call.1} parent=0 // loop_footer_branch
    %13 = sbr.rel target = $region3
  $region8: #{tpu_custom_call.1} parent=0 // loop_exit
    _

// kernel: tpu_custom_call.1
$region0: #{tpu_custom_call.1}
  #allocation0 [shape = 'u32[]', space=smem, size = 0x4, offset = 0x4, fixed_abs, tag = 'smem constant byte address 0x4 - core index']
  #allocation1 [shape = 'u32[72,128]{1,0:T(1,128)}', space=vmem, size = 0x9000, scoped, tag = 'internal scratch']
  %s0 = inlined_call_operand.vmem [shape: f32[2,256,32], index: 0, kind: input, shape index: {}]
  %s1 = inlined_call_operand.vmem [shape: f32[1,32], index: 1, kind: input, shape index: {}]
  %s2 = inlined_call_operand.vmem [shape: f32[1,32], index: 2, kind: input, shape index: {}]
  %s3 = inlined_call_operand.vmem [shape: bf16[32,96], index: 3, kind: input, shape index: {}]
  %s4 = inlined_call_operand.vmem [shape: f32[1,96], index: 4, kind: input, shape index: {}]
  %s5 = inlined_call_operand.vmem [shape: bf16[2,256,32], index: 5, kind: output, shape index: {0}]
  %s6 = inlined_call_operand.vmem [shape: bf16[2,256,32], index: 6, kind: output, shape index: {1}]
  %s7 = inlined_call_operand.vmem [shape: bf16[2,256,32], index: 7, kind: output, shape index: {2}]
  %8 = xla_tuple %s5, %s6, %s7
  %s9 = sld [smem:[#allocation0]]
  $region69: #{tpu_custom_call.1} parent=0
    _
  %s11 = ssub.s32 1, %s9
  %s12 = scalar_select 0, %s11, %s9
  loop: start=0, step=1, limit=6
  $region2: #{tpu_custom_call.1} parent=0 // loop_pre_header
    _
  $region3: #{tpu_custom_call.1} parent=0 // loop_header
    %s14 = sphi 0, %s18
    %p15 = scmp.ge.s32.totalorder %s14, 6
    %s21 = sphi 0, %s33
    %s22 = sphi 0, %s29
    %s23 = sphi 0, %s21
    %s24 = sphi 0, %s22
    %s25 = sphi 0, %s23
    %s26 = sphi 0, %s24
    %s38 = sphi 0, %s40
    %s41 = sphi 0, %s38
    %s42 = sphi 0, %s41
    %s58 = sphi 0, %s42
    %s62 = sphi 0, %s62
    %s64 = sphi 0, %s62
    %s65 = sphi 0, %s64
    %s79 = sphi 0, %s65
    %s83 = sphi 0, %s83
    %s85 = sphi 0, %s83
    %s86 = sphi 0, %s85
    %s100 = sphi 0, %s86
    %s104 = sphi 0, %s104
    %s106 = sphi 0, %s104
    %s107 = sphi 0, %s106
    %s121 = sphi 0, %s107
    %s125 = sphi 0, %s125
    %s127 = sphi 0, %s125
    %s128 = sphi 0, %s127
    %s142 = sphi 0, %s128
    %s150 = sphi 0, %s152
    %s153 = sphi 0, %s150
    %s154 = sphi 0, %s153
    %s170 = sphi 0, %s154
    %s178 = sphi 0, %s180
    %s181 = sphi 0, %s178
    %s182 = sphi 0, %s181
    %s198 = sphi 0, %s182
    %s206 = sphi 0, %s208
    %s209 = sphi 0, %s206
    %s210 = sphi 0, %s209
    %s226 = sphi 0, %s210
  $region4: #{tpu_custom_call.1} parent=0 // loop_header_branch
    %17 = sbr.rel (%p15) target = $region8
  $region5: #{tpu_custom_call.1} parent=0 // loop_body
    %s19 = ssub.s32 %s14, 1
    %s20 = ssub.s32 %s14, 2
    %s27 = sadd.s32 1, %s22
    %p28 = scmp.ge.s32.totalorder %s27, 2
    %s29 = scalar_select %p28, 0, %s27
    %s30 = sadd.s32 1, %s21
    %s31 = scalar_select %p28, %s30, %s21
    %p32 = scmp.ge.s32.totalorder %s31, 2
    %s33 = scalar_select %p32, 0, %s31
    %s34 = ssub.s32 %s21, %s33
    %s35 = ssub.s32 %s22, %s29
    %s36 = sor.u32 %s34, %s35
    %p37 = scmp.eq.s32.totalorder %s36, 0
    %s39 = sadd.s32 %s38, 1
    %s40 = scalar_select %p37, %s38, %s39
    %p43 = pneg %p37
    %p44 = scmp.eq.s32.totalorder %s14, 3
    %p45 = por %p43, %p44
    %p46 = scmp.ne.s32.totalorder %s38, %s41
    %p47 = scmp.eq.s32.totalorder %s14, 0
    %p48 = por %p46, %p47
    %p49 = scmp.ne.s32.totalorder %s38, %s41
    %p50 = scmp.eq.s32.totalorder %s19, 3
    %p51 = por %p49, %p50
    %p52 = scmp.ne.s32.totalorder %s41, %s42
    %p53 = scmp.eq.s32.totalorder %s19, 0
    %p54 = por %p52, %p53
    %p55 = scmp.ne.s32.totalorder %s41, %s42
    %p56 = scmp.eq.s32.totalorder %s20, 3
    %p57 = por %p55, %p56
    %p59 = scmp.ne.s32.totalorder %s42, %s58
    %p60 = scmp.eq.s32.totalorder %s20, 0
    %p61 = por %p59, %p60
    %s63 = sadd.s32 %s62, 1
    %p66 = scmp.eq.s32.totalorder %s14, 3
    %p67 = scmp.ne.s32.totalorder %s62, %s64
    %p68 = scmp.eq.s32.totalorder %s14, 0
    %p69 = por %p67, %p68
    %p70 = scmp.ne.s32.totalorder %s62, %s64
    %p71 = scmp.eq.s32.totalorder %s19, 3
    %p72 = por %p70, %p71
    %p73 = scmp.ne.s32.totalorder %s64, %s65
    %p74 = scmp.eq.s32.totalorder %s19, 0
    %p75 = por %p73, %p74
    %p76 = scmp.ne.s32.totalorder %s64, %s65
    %p77 = scmp.eq.s32.totalorder %s20, 3
    %p78 = por %p76, %p77
    %p80 = scmp.ne.s32.totalorder %s65, %s79
    %p81 = scmp.eq.s32.totalorder %s20, 0
    %p82 = por %p80, %p81
    %s84 = sadd.s32 %s83, 1
    %p87 = scmp.eq.s32.totalorder %s14, 3
    %p88 = scmp.ne.s32.totalorder %s83, %s85
    %p89 = scmp.eq.s32.totalorder %s14, 0
    %p90 = por %p88, %p89
    %p91 = scmp.ne.s32.totalorder %s83, %s85
    %p92 = scmp.eq.s32.totalorder %s19, 3
    %p93 = por %p91, %p92
    %p94 = scmp.ne.s32.totalorder %s85, %s86
    %p95 = scmp.eq.s32.totalorder %s19, 0
    %p96 = por %p94, %p95
    %p97 = scmp.ne.s32.totalorder %s85, %s86
    %p98 = scmp.eq.s32.totalorder %s20, 3
    %p99 = por %p97, %p98
    %p101 = scmp.ne.s32.totalorder %s86, %s100
    %p102 = scmp.eq.s32.totalorder %s20, 0
    %p103 = por %p101, %p102
    %s105 = sadd.s32 %s104, 1
    %p108 = scmp.eq.s32.totalorder %s14, 3
    %p109 = scmp.ne.s32.totalorder %s104, %s106
    %p110 = scmp.eq.s32.totalorder %s14, 0
    %p111 = por %p109, %p110
    %p112 = scmp.ne.s32.totalorder %s104, %s106
    %p113 = scmp.eq.s32.totalorder %s19, 3
    %p114 = por %p112, %p113
    %p115 = scmp.ne.s32.totalorder %s106, %s107
    %p116 = scmp.eq.s32.totalorder %s19, 0
    %p117 = por %p115, %p116
    %p118 = scmp.ne.s32.totalorder %s106, %s107
    %p119 = scmp.eq.s32.totalorder %s20, 3
    %p120 = por %p118, %p119
    %p122 = scmp.ne.s32.totalorder %s107, %s121
    %p123 = scmp.eq.s32.totalorder %s20, 0
    %p124 = por %p122, %p123
    %s126 = sadd.s32 %s125, 1
    %p129 = scmp.eq.s32.totalorder %s14, 3
    %p130 = scmp.ne.s32.totalorder %s125, %s127
    %p131 = scmp.eq.s32.totalorder %s14, 0
    %p132 = por %p130, %p131
    %p133 = scmp.ne.s32.totalorder %s125, %s127
    %p134 = scmp.eq.s32.totalorder %s19, 3
    %p135 = por %p133, %p134
    %p136 = scmp.ne.s32.totalorder %s127, %s128
    %p137 = scmp.eq.s32.totalorder %s19, 0
    %p138 = por %p136, %p137
    %p139 = scmp.ne.s32.totalorder %s127, %s128
    %p140 = scmp.eq.s32.totalorder %s20, 3
    %p141 = por %p139, %p140
    %p143 = scmp.ne.s32.totalorder %s128, %s142
    %p144 = scmp.eq.s32.totalorder %s20, 0
    %p145 = por %p143, %p144
    %s146 = ssub.s32 %s21, %s33
    %s147 = ssub.s32 %s22, %s29
    %s148 = sor.u32 %s146, %s147
    %p149 = scmp.eq.s32.totalorder %s148, 0
    %s151 = sadd.s32 %s150, 1
    %s152 = scalar_select %p149, %s150, %s151
    %p155 = pneg %p149
    %p156 = scmp.eq.s32.totalorder %s14, 3
    %p157 = por %p155, %p156
    %p158 = scmp.ne.s32.totalorder %s150, %s153
    %p159 = scmp.eq.s32.totalorder %s14, 0
    %p160 = por %p158, %p159
    %p161 = scmp.ne.s32.totalorder %s150, %s153
    %p162 = scmp.eq.s32.totalorder %s19, 3
    %p163 = por %p161, %p162
    %p164 = scmp.ne.s32.totalorder %s153, %s154
    %p165 = scmp.eq.s32.totalorder %s19, 0
    %p166 = por %p164, %p165
    %p167 = scmp.ne.s32.totalorder %s153, %s154
    %p168 = scmp.eq.s32.totalorder %s20, 3
    %p169 = por %p167, %p168
    %p171 = scmp.ne.s32.totalorder %s154, %s170
    %p172 = scmp.eq.s32.totalorder %s20, 0
    %p173 = por %p171, %p172
    %s174 = ssub.s32 %s21, %s33
    %s175 = ssub.s32 %s22, %s29
    %s176 = sor.u32 %s174, %s175
    %p177 = scmp.eq.s32.totalorder %s176, 0
    %s179 = sadd.s32 %s178, 1
    %s180 = scalar_select %p177, %s178, %s179
    %p183 = pneg %p177
    %p184 = scmp.eq.s32.totalorder %s14, 3
    %p185 = por %p183, %p184
    %p186 = scmp.ne.s32.totalorder %s178, %s181
    %p187 = scmp.eq.s32.totalorder %s14, 0
    %p188 = por %p186, %p187
    %p189 = scmp.ne.s32.totalorder %s178, %s181
    %p190 = scmp.eq.s32.totalorder %s19, 3
    %p191 = por %p189, %p190
    %p192 = scmp.ne.s32.totalorder %s181, %s182
    %p193 = scmp.eq.s32.totalorder %s19, 0
    %p194 = por %p192, %p193
    %p195 = scmp.ne.s32.totalorder %s181, %s182
    %p196 = scmp.eq.s32.totalorder %s20, 3
    %p197 = por %p195, %p196
    %p199 = scmp.ne.s32.totalorder %s182, %s198
    %p200 = scmp.eq.s32.totalorder %s20, 0
    %p201 = por %p199, %p200
    %s202 = ssub.s32 %s21, %s33
    %s203 = ssub.s32 %s22, %s29
    %s204 = sor.u32 %s202, %s203
    %p205 = scmp.eq.s32.totalorder %s204, 0
    %s207 = sadd.s32 %s206, 1
    %s208 = scalar_select %p205, %s206, %s207
    %p211 = pneg %p205
    %p212 = scmp.eq.s32.totalorder %s14, 3
    %p213 = por %p211, %p212
    %p214 = scmp.ne.s32.totalorder %s206, %s209
    %p215 = scmp.eq.s32.totalorder %s14, 0
    %p216 = por %p214, %p215
    %p217 = scmp.ne.s32.totalorder %s206, %s209
    %p218 = scmp.eq.s32.totalorder %s19, 3
    %p219 = por %p217, %p218
    %p220 = scmp.ne.s32.totalorder %s209, %s210
    %p221 = scmp.eq.s32.totalorder %s19, 0
    %p222 = por %p220, %p221
    %p223 = scmp.ne.s32.totalorder %s209, %s210
    %p224 = scmp.eq.s32.totalorder %s20, 3
    %p225 = por %p223, %p224
    %p227 = scmp.ne.s32.totalorder %s210, %s226
    %p228 = scmp.eq.s32.totalorder %s20, 0
    %p229 = por %p227, %p228
    %p230 = scmp.le.s32.totalorder 1, %s14
    %p231 = scmp.lt.s32.totalorder %s14, 5
    %p232 = pnand %p230, %p231
    %p233 = pneg %p232
    // Predicated region
    $region9: #{tpu_custom_call.1} parent=5 // pred_check
      _
    $region10: #{tpu_custom_call.1} parent=5 // pred_check_branch
      %235 = sbr.rel (%p232) target = $region12
    $region11: #{tpu_custom_call.1} parent=5 // pred_region
      %s236 = ssub.s32 %s14, 1
      // Predicated region
      $region13: #{tpu_custom_call.1} parent=11 // pred_check
        %p237 = pneg %p75
      $region14: #{tpu_custom_call.1} parent=11 // pred_check_branch
        %239 = sbr.rel (%p237) target = $region16
      $region15: #{tpu_custom_call.1} parent=11 // pred_region
        _
      $region16: #{tpu_custom_call.1} parent=11 // pred_fallthru
        _
      // Predicated region
      $region17: #{tpu_custom_call.1} parent=11 // pred_check
        %p240 = pneg %p96
      $region18: #{tpu_custom_call.1} parent=11 // pred_check_branch
        %242 = sbr.rel (%p240) target = $region20
      $region19: #{tpu_custom_call.1} parent=11 // pred_region
        _
      $region20: #{tpu_custom_call.1} parent=11 // pred_fallthru
        _
      // Predicated region
      $region21: #{tpu_custom_call.1} parent=11 // pred_check
        %p243 = pneg %p117
      $region22: #{tpu_custom_call.1} parent=11 // pred_check_branch
        %245 = sbr.rel (%p243) target = $region24
      $region23: #{tpu_custom_call.1} parent=11 // pred_region
        _
      $region24: #{tpu_custom_call.1} parent=11 // pred_fallthru
        _
      // Predicated region
      $region25: #{tpu_custom_call.1} parent=11 // pred_check
        %p246 = pneg %p138
      $region26: #{tpu_custom_call.1} parent=11 // pred_check_branch
        %248 = sbr.rel (%p246) target = $region28
      $region27: #{tpu_custom_call.1} parent=11 // pred_region
        _
      $region28: #{tpu_custom_call.1} parent=11 // pred_fallthru
        _
    $region12: #{tpu_custom_call.1} parent=5 // pred_fallthru
      _
    %p249 = scmp.lt.s32.totalorder %s14, 4
    // Predicated region
    $region29: #{tpu_custom_call.1} parent=5 // pred_check
      %p250 = pneg %p249
    $region30: #{tpu_custom_call.1} parent=5 // pred_check_branch
      %252 = sbr.rel (%p250) target = $region32
    $region31: #{tpu_custom_call.1} parent=5 // pred_region
      // Predicated region
      $region33: #{tpu_custom_call.1} parent=31 // pred_check
        %p253 = pneg %p48
      $region34: #{tpu_custom_call.1} parent=31 // pred_check_branch
        %255 = sbr.rel (%p253) target = $region36
      $region35: #{tpu_custom_call.1} parent=31 // pred_region
        %s256 = smul.u32 16, %s22
        %p257 = scmp.lt.s32.totalorder %s21, 1
        %s258 = scalar_select %p257, %s21, 1
        %p259 = scmp.lt.s32.totalorder %s256, 31
        %s260 = scalar_select %p259, %s256, 31
        %s261 = smul.addr %s258, 32
        %s262 = sadd.s32 %s260, %s261
        %s263 = smul.addr %s262, 8
        %s264 = scalar_lea.vmem %s0, %s263
        %s265 = smul.u32 16, %s22
      $region36: #{tpu_custom_call.1} parent=31 // pred_fallthru
        _
    $region32: #{tpu_custom_call.1} parent=5 // pred_fallthru
      _
    %p266 = scmp.le.s32.totalorder 1, %s14
    %p267 = scmp.lt.s32.totalorder %s14, 5
    %p268 = pnand %p266, %p267
    %p269 = pneg %p268
    // Predicated region
    $region37: #{tpu_custom_call.1} parent=5 // pred_check
      _
    $region38: #{tpu_custom_call.1} parent=5 // pred_check_branch
      %271 = sbr.rel (%p268) target = $region40
    $region39: #{tpu_custom_call.1} parent=5 // pred_region
      %s272 = ssub.s32 %s14, 1
      %s273 = smul.u32 16, %s24
      %p274 = scmp.lt.s32.totalorder %s23, 1
      %s275 = scalar_select %p274, %s23, 1
      %p276 = scmp.lt.s32.totalorder %s273, 31
      %s277 = scalar_select %p276, %s273, 31
      %s278 = smul.addr %s275, 32
      %s279 = sadd.s32 %s277, %s278
      %s280 = smul.addr %s279, 8
      %s281 = scalar_lea.vmem %s0, %s280
      %p282 = pneg %p54
      %p283 = pneg %p51
      %p284 = pneg %p75
      %p285 = pneg %p72
      %p286 = pneg %p96
      %p287 = pneg %p93
      %p288 = pneg %p117
      %p289 = pneg %p114
      %p290 = pneg %p138
      %p291 = pneg %p135
      %p292 = pneg %p166
      %p293 = pneg %p163
      %s294 = smul.u32 16, %s24
      %p295 = scmp.lt.s32.totalorder %s23, 1
      %s296 = scalar_select %p295, %s23, 1
      %p297 = scmp.lt.s32.totalorder %s294, 31
      %s298 = scalar_select %p297, %s294, 31
      %s299 = smul.addr %s296, 32
      %s300 = sadd.s32 %s298, %s299
      %s301 = smul.addr %s300, 4
      %s302 = scalar_lea.vmem %s5, %s301
      %p303 = pneg %p194
      %p304 = pneg %p191
      %s305 = smul.u32 16, %s24
      %p306 = scmp.lt.s32.totalorder %s23, 1
      %s307 = scalar_select %p306, %s23, 1
      %p308 = scmp.lt.s32.totalorder %s305, 31
      %s309 = scalar_select %p308, %s305, 31
      %s310 = smul.addr %s307, 32
      %s311 = sadd.s32 %s309, %s310
      %s312 = smul.addr %s311, 4
      %s313 = scalar_lea.vmem %s6, %s312
      %p314 = pneg %p222
      %p315 = pneg %p219
      %s316 = smul.u32 16, %s24
      %p317 = scmp.lt.s32.totalorder %s23, 1
      %s318 = scalar_select %p317, %s23, 1
      %p319 = scmp.lt.s32.totalorder %s316, 31
      %s320 = scalar_select %p319, %s316, 31
      %s321 = smul.addr %s318, 32
      %s322 = sadd.s32 %s320, %s321
      %s323 = smul.addr %s322, 4
      %s324 = scalar_lea.vmem %s7, %s323
      %s325 = smul.u32 16, %s24
      %p326 = scmp.lt.s32.totalorder %s23, 1
      %s327 = scalar_select %p326, %s23, 1
      %p328 = scmp.lt.s32.totalorder %s325, 31
      %s329 = scalar_select %p328, %s325, 31
      %s330 = smul.addr %s327, 32
      %s331 = sadd.s32 %s329, %s330
      %s332 = smul.addr %s331, 8
      %s333 = scalar_lea.vmem %s0, %s332
      %s334 = smul.u32 16, %s24
      %s335 = smul.u32 16, %s24
      %p336 = scmp.lt.s32.totalorder %s23, 1
      %s337 = scalar_select %p336, %s23, 1
      %p338 = scmp.lt.s32.totalorder %s335, 31
      %s339 = scalar_select %p338, %s335, 31
      %s340 = smul.addr %s337, 32
      %s341 = sadd.s32 %s339, %s340
      %s342 = smul.addr %s341, 4
      %s343 = scalar_lea.vmem %s5, %s342
      %s344 = smul.u32 16, %s24
      %s345 = smul.u32 16, %s24
      %p346 = scmp.lt.s32.totalorder %s23, 1
      %s347 = scalar_select %p346, %s23, 1
      %p348 = scmp.lt.s32.totalorder %s345, 31
      %s349 = scalar_select %p348, %s345, 31
      %s350 = smul.addr %s347, 32
      %s351 = sadd.s32 %s349, %s350
      %s352 = smul.addr %s351, 4
      %s353 = scalar_lea.vmem %s6, %s352
      %s354 = smul.u32 16, %s24
      %s355 = smul.u32 16, %s24
      %p356 = scmp.lt.s32.totalorder %s23, 1
      %s357 = scalar_select %p356, %s23, 1
      %p358 = scmp.lt.s32.totalorder %s355, 31
      %s359 = scalar_select %p358, %s355, 31
      %s360 = smul.addr %s357, 32
      %s361 = sadd.s32 %s359, %s360
      %s362 = smul.addr %s361, 4
      %s363 = scalar_lea.vmem %s7, %s362
      %s364 = smul.u32 16, %s24
      %v366 = vld [vmem:[%s333] sm:$0xff]
      %v367 = vld [vmem:[%s333 + $0x8] sm:$0xff]
      %v368 = vld [vmem:[%s333 + $0x10] sm:$0xff]
      %v369 = vld [vmem:[%s333 + $0x18] sm:$0xff]
      %v370 = vld [vmem:[%s333 + $0x20] sm:$0xff]
      %v371 = vld [vmem:[%s333 + $0x28] sm:$0xff]
      %v372 = vld [vmem:[%s333 + $0x30] sm:$0xff]
      %v373 = vld [vmem:[%s333 + $0x38] sm:$0xff]
      %v374 = vld [vmem:[%s333 + $0x40] sm:$0xff]
      %v375 = vld [vmem:[%s333 + $0x48] sm:$0xff]
      %v376 = vld [vmem:[%s333 + $0x50] sm:$0xff]
      %v377 = vld [vmem:[%s333 + $0x58] sm:$0xff]
      %v378 = vld [vmem:[%s333 + $0x60] sm:$0xff]
      %v379 = vld [vmem:[%s333 + $0x68] sm:$0xff]
      %v380 = vld [vmem:[%s333 + $0x70] sm:$0xff]
      %v381 = vld [vmem:[%s333 + $0x78] sm:$0xff]
      %v382 = vld [vmem:[%s1] sm:$0x1]
      %v383 = vld [vmem:[%s2] sm:$0x1]
      %vm384 = vcmask 261120
      %v385 = vsel %vm384, %v366, 0.0
      %386 = vadd.xlane.f32.xlu0 %v385
      %v387 = vpop.xlane.xlu0 %386
      %v388 = vsel %vm384, %v367, 0.0
      %389 = vadd.xlane.f32.xlu0 %v388
      %v390 = vpop.xlane.xlu0 %389
      %v391 = vsel %vm384, %v368, 0.0
      %392 = vadd.xlane.f32.xlu0 %v391
      %v393 = vpop.xlane.xlu0 %392
      %v394 = vsel %vm384, %v369, 0.0
      %395 = vadd.xlane.f32.xlu0 %v394
      %v396 = vpop.xlane.xlu0 %395
      %v397 = vsel %vm384, %v370, 0.0
      %398 = vadd.xlane.f32.xlu0 %v397
      %v399 = vpop.xlane.xlu0 %398
      %v400 = vsel %vm384, %v371, 0.0
      %401 = vadd.xlane.f32.xlu0 %v400
      %v402 = vpop.xlane.xlu0 %401
      %v403 = vsel %vm384, %v372, 0.0
      %404 = vadd.xlane.f32.xlu0 %v403
      %v405 = vpop.xlane.xlu0 %404
      %v406 = vsel %vm384, %v373, 0.0
      %407 = vadd.xlane.f32.xlu0 %v406
      %v408 = vpop.xlane.xlu0 %407
      %v409 = vsel %vm384, %v374, 0.0
      %410 = vadd.xlane.f32.xlu0 %v409
      %v411 = vpop.xlane.xlu0 %410
      %v412 = vsel %vm384, %v375, 0.0
      %413 = vadd.xlane.f32.xlu0 %v412
      %v414 = vpop.xlane.xlu0 %413
      %v415 = vsel %vm384, %v376, 0.0
      %416 = vadd.xlane.f32.xlu0 %v415
      %v417 = vpop.xlane.xlu0 %416
      %v418 = vsel %vm384, %v377, 0.0
      %419 = vadd.xlane.f32.xlu0 %v418
      %v420 = vpop.xlane.xlu0 %419
      %v421 = vsel %vm384, %v378, 0.0
      %422 = vadd.xlane.f32.xlu0 %v421
      %v423 = vpop.xlane.xlu0 %422
      %v424 = vsel %vm384, %v379, 0.0
      %425 = vadd.xlane.f32.xlu0 %v424
      %v426 = vpop.xlane.xlu0 %425
      %v427 = vsel %vm384, %v380, 0.0
      %428 = vadd.xlane.f32.xlu0 %v427
      %v429 = vpop.xlane.xlu0 %428
      %v430 = vsel %vm384, %v381, 0.0
      %431 = vadd.xlane.f32.xlu0 %v430
      %v432 = vpop.xlane.xlu0 %431
      %v433 = vrcp.pop 32.0
      %v434 = vmul.f32 32.0, %v433
      %v435 = vsub.f32 1.0, %v434
      %v436 = vmul.f32 %v433, %v435
      %v437 = vadd.f32 %v433, %v436
      %vm438 = vweird.f32 %v433
      %v439 = vsel %vm438, %v433, %v437
      %v440 = vmul.f32 %v387, %v439
      %v441 = vmul.f32 %v390, %v439
      %v442 = vmul.f32 %v393, %v439
      %v443 = vmul.f32 %v396, %v439
      %v444 = vmul.f32 %v399, %v439
      %v445 = vmul.f32 %v402, %v439
      %v446 = vmul.f32 %v405, %v439
      %v447 = vmul.f32 %v408, %v439
      %v448 = vmul.f32 %v411, %v439
      %v449 = vmul.f32 %v414, %v439
      %v450 = vmul.f32 %v417, %v439
      %v451 = vmul.f32 %v420, %v439
      %v452 = vmul.f32 %v423, %v439
      %v453 = vmul.f32 %v426, %v439
      %v454 = vmul.f32 %v429, %v439
      %v455 = vmul.f32 %v432, %v439
      %v456 = vsub.f32 %v366, %v440
      %v457 = vsub.f32 %v367, %v441
      %v458 = vsub.f32 %v368, %v442
      %v459 = vsub.f32 %v369, %v443
      %v460 = vsub.f32 %v370, %v444
      %v461 = vsub.f32 %v371, %v445
      %v462 = vsub.f32 %v372, %v446
      %v463 = vsub.f32 %v373, %v447
      %v464 = vsub.f32 %v374, %v448
      %v465 = vsub.f32 %v375, %v449
      %v466 = vsub.f32 %v376, %v450
      %v467 = vsub.f32 %v377, %v451
      %v468 = vsub.f32 %v378, %v452
      %v469 = vsub.f32 %v379, %v453
      %v470 = vsub.f32 %v380, %v454
      %v471 = vsub.f32 %v381, %v455
      %v472 = vmul.f32 %v456, %v456
      %v473 = vmul.f32 %v457, %v457
      %v474 = vmul.f32 %v458, %v458
      %v475 = vmul.f32 %v459, %v459
      %v476 = vmul.f32 %v460, %v460
      %v477 = vmul.f32 %v461, %v461
      %v478 = vmul.f32 %v462, %v462
      %v479 = vmul.f32 %v463, %v463
      %v480 = vmul.f32 %v464, %v464
      %v481 = vmul.f32 %v465, %v465
      %v482 = vmul.f32 %v466, %v466
      %v483 = vmul.f32 %v467, %v467
      %v484 = vmul.f32 %v468, %v468
      %v485 = vmul.f32 %v469, %v469
      %v486 = vmul.f32 %v470, %v470
      %v487 = vmul.f32 %v471, %v471
      %v488 = vsel %vm384, %v472, 0.0
      %489 = vadd.xlane.f32.xlu0 %v488
      %v490 = vpop.xlane.xlu0 %489
      %v491 = vsel %vm384, %v473, 0.0
      %492 = vadd.xlane.f32.xlu0 %v491
      %v493 = vpop.xlane.xlu0 %492
      %v494 = vsel %vm384, %v474, 0.0
      %495 = vadd.xlane.f32.xlu0 %v494
      %v496 = vpop.xlane.xlu0 %495
      %v497 = vsel %vm384, %v475, 0.0
      %498 = vadd.xlane.f32.xlu0 %v497
      %v499 = vpop.xlane.xlu0 %498
      %v500 = vsel %vm384, %v476, 0.0
      %501 = vadd.xlane.f32.xlu0 %v500
      %v502 = vpop.xlane.xlu0 %501
      %v503 = vsel %vm384, %v477, 0.0
      %504 = vadd.xlane.f32.xlu0 %v503
      %v505 = vpop.xlane.xlu0 %504
      %v506 = vsel %vm384, %v478, 0.0
      %507 = vadd.xlane.f32.xlu0 %v506
      %v508 = vpop.xlane.xlu0 %507
      %v509 = vsel %vm384, %v479, 0.0
      %510 = vadd.xlane.f32.xlu0 %v509
      %v511 = vpop.xlane.xlu0 %510
      %v512 = vsel %vm384, %v480, 0.0
      %513 = vadd.xlane.f32.xlu0 %v512
      %v514 = vpop.xlane.xlu0 %513
      %v515 = vsel %vm384, %v481, 0.0
      %516 = vadd.xlane.f32.xlu0 %v515
      %v517 = vpop.xlane.xlu0 %516
      %v518 = vsel %vm384, %v482, 0.0
      %519 = vadd.xlane.f32.xlu0 %v518
      %v520 = vpop.xlane.xlu0 %519
      %v521 = vsel %vm384, %v483, 0.0
      %522 = vadd.xlane.f32.xlu0 %v521
      %v523 = vpop.xlane.xlu0 %522
      %v524 = vsel %vm384, %v484, 0.0
      %525 = vadd.xlane.f32.xlu0 %v524
      %v526 = vpop.xlane.xlu0 %525
      %v527 = vsel %vm384, %v485, 0.0
      %528 = vadd.xlane.f32.xlu0 %v527
      %v529 = vpop.xlane.xlu0 %528
      %v530 = vsel %vm384, %v486, 0.0
      %531 = vadd.xlane.f32.xlu0 %v530
      %v532 = vpop.xlane.xlu0 %531
      %v533 = vsel %vm384, %v487, 0.0
      %534 = vadd.xlane.f32.xlu0 %v533
      %v535 = vpop.xlane.xlu0 %534
      %v536 = vmul.f32 %v490, %v439
      %v537 = vmul.f32 %v493, %v439
      %v538 = vmul.f32 %v496, %v439
      %v539 = vmul.f32 %v499, %v439
      %v540 = vmul.f32 %v502, %v439
      %v541 = vmul.f32 %v505, %v439
      %v542 = vmul.f32 %v508, %v439
      %v543 = vmul.f32 %v511, %v439
      %v544 = vmul.f32 %v514, %v439
      %v545 = vmul.f32 %v517, %v439
      %v546 = vmul.f32 %v520, %v439
      %v547 = vmul.f32 %v523, %v439
      %v548 = vmul.f32 %v526, %v439
      %v549 = vmul.f32 %v529, %v439
      %v550 = vmul.f32 %v532, %v439
      %v551 = vmul.f32 %v535, %v439
      %v552 = vadd.f32 %v536, 1e-05
      %v553 = vadd.f32 %v537, 1e-05
      %v554 = vadd.f32 %v538, 1e-05
      %v555 = vadd.f32 %v539, 1e-05
      %v556 = vadd.f32 %v540, 1e-05
      %v557 = vadd.f32 %v541, 1e-05
      %v558 = vadd.f32 %v542, 1e-05
      %v559 = vadd.f32 %v543, 1e-05
      %v560 = vadd.f32 %v544, 1e-05
      %v561 = vadd.f32 %v545, 1e-05
      %v562 = vadd.f32 %v546, 1e-05
      %v563 = vadd.f32 %v547, 1e-05
      %v564 = vadd.f32 %v548, 1e-05
      %v565 = vadd.f32 %v549, 1e-05
      %v566 = vadd.f32 %v550, 1e-05
      %v567 = vadd.f32 %v551, 1e-05
      %v568 = vrsqrt.pop %v552
      %v569 = vmul.f32 %v568, %v552
      %v570 = vmul.f32 %v569, %v568
      %v571 = vmul.f32 0.5, %v570
      %v572 = vsub.f32 1.5, %v571
      %v573 = vmul.f32 %v568, %v572
      %vm574 = vweird.f32 %v552
      %vm575 = vweird.f32 %v568
      %vm576 = vmor %vm574, %vm575
      %v577 = vsel %vm576, %v568, %v573
      %v578 = vrsqrt.pop %v553
      %v579 = vmul.f32 %v578, %v553
      %v580 = vmul.f32 %v579, %v578
      %v581 = vmul.f32 0.5, %v580
      %v582 = vsub.f32 1.5, %v581
      %v583 = vmul.f32 %v578, %v582
      %vm584 = vweird.f32 %v553
      %vm585 = vweird.f32 %v578
      %vm586 = vmor %vm584, %vm585
      %v587 = vsel %vm586, %v578, %v583
      %v588 = vrsqrt.pop %v554
      %v589 = vmul.f32 %v588, %v554
      %v590 = vmul.f32 %v589, %v588
      %v591 = vmul.f32 0.5, %v590
      %v592 = vsub.f32 1.5, %v591
      %v593 = vmul.f32 %v588, %v592
      %vm594 = vweird.f32 %v554
      %vm595 = vweird.f32 %v588
      %vm596 = vmor %vm594, %vm595
      %v597 = vsel %vm596, %v588, %v593
      %v598 = vrsqrt.pop %v555
      %v599 = vmul.f32 %v598, %v555
      %v600 = vmul.f32 %v599, %v598
      %v601 = vmul.f32 0.5, %v600
      %v602 = vsub.f32 1.5, %v601
      %v603 = vmul.f32 %v598, %v602
      %vm604 = vweird.f32 %v555
      %vm605 = vweird.f32 %v598
      %vm606 = vmor %vm604, %vm605
      %v607 = vsel %vm606, %v598, %v603
      %v608 = vrsqrt.pop %v556
      %v609 = vmul.f32 %v608, %v556
      %v610 = vmul.f32 %v609, %v608
      %v611 = vmul.f32 0.5, %v610
      %v612 = vsub.f32 1.5, %v611
      %v613 = vmul.f32 %v608, %v612
      %vm614 = vweird.f32 %v556
      %vm615 = vweird.f32 %v608
      %vm616 = vmor %vm614, %vm615
      %v617 = vsel %vm616, %v608, %v613
      %v618 = vrsqrt.pop %v557
      %v619 = vmul.f32 %v618, %v557
      %v620 = vmul.f32 %v619, %v618
      %v621 = vmul.f32 0.5, %v620
      %v622 = vsub.f32 1.5, %v621
      %v623 = vmul.f32 %v618, %v622
      %vm624 = vweird.f32 %v557
      %vm625 = vweird.f32 %v618
      %vm626 = vmor %vm624, %vm625
      %v627 = vsel %vm626, %v618, %v623
      %v628 = vrsqrt.pop %v558
      %v629 = vmul.f32 %v628, %v558
      %v630 = vmul.f32 %v629, %v628
      %v631 = vmul.f32 0.5, %v630
      %v632 = vsub.f32 1.5, %v631
      %v633 = vmul.f32 %v628, %v632
      %vm634 = vweird.f32 %v558
      %vm635 = vweird.f32 %v628
      %vm636 = vmor %vm634, %vm635
      %v637 = vsel %vm636, %v628, %v633
      %v638 = vrsqrt.pop %v559
      %v639 = vmul.f32 %v638, %v559
      %v640 = vmul.f32 %v639, %v638
      %v641 = vmul.f32 0.5, %v640
      %v642 = vsub.f32 1.5, %v641
      %v643 = vmul.f32 %v638, %v642
      %vm644 = vweird.f32 %v559
      %vm645 = vweird.f32 %v638
      %vm646 = vmor %vm644, %vm645
      %v647 = vsel %vm646, %v638, %v643
      %v648 = vrsqrt.pop %v560
      %v649 = vmul.f32 %v648, %v560
      %v650 = vmul.f32 %v649, %v648
      %v651 = vmul.f32 0.5, %v650
      %v652 = vsub.f32 1.5, %v651
      %v653 = vmul.f32 %v648, %v652
      %vm654 = vweird.f32 %v560
      %vm655 = vweird.f32 %v648
      %vm656 = vmor %vm654, %vm655
      %v657 = vsel %vm656, %v648, %v653
      %v658 = vrsqrt.pop %v561
      %v659 = vmul.f32 %v658, %v561
      %v660 = vmul.f32 %v659, %v658
      %v661 = vmul.f32 0.5, %v660
      %v662 = vsub.f32 1.5, %v661
      %v663 = vmul.f32 %v658, %v662
      %vm664 = vweird.f32 %v561
      %vm665 = vweird.f32 %v658
      %vm666 = vmor %vm664, %vm665
      %v667 = vsel %vm666, %v658, %v663
      %v668 = vrsqrt.pop %v562
      %v669 = vmul.f32 %v668, %v562
      %v670 = vmul.f32 %v669, %v668
      %v671 = vmul.f32 0.5, %v670
      %v672 = vsub.f32 1.5, %v671
      %v673 = vmul.f32 %v668, %v672
      %vm674 = vweird.f32 %v562
      %vm675 = vweird.f32 %v668
      %vm676 = vmor %vm674, %vm675
      %v677 = vsel %vm676, %v668, %v673
      %v678 = vrsqrt.pop %v563
      %v679 = vmul.f32 %v678, %v563
      %v680 = vmul.f32 %v679, %v678
      %v681 = vmul.f32 0.5, %v680
      %v682 = vsub.f32 1.5, %v681
      %v683 = vmul.f32 %v678, %v682
      %vm684 = vweird.f32 %v563
      %vm685 = vweird.f32 %v678
      %vm686 = vmor %vm684, %vm685
      %v687 = vsel %vm686, %v678, %v683
      %v688 = vrsqrt.pop %v564
      %v689 = vmul.f32 %v688, %v564
      %v690 = vmul.f32 %v689, %v688
      %v691 = vmul.f32 0.5, %v690
      %v692 = vsub.f32 1.5, %v691
      %v693 = vmul.f32 %v688, %v692
      %vm694 = vweird.f32 %v564
      %vm695 = vweird.f32 %v688
      %vm696 = vmor %vm694, %vm695
      %v697 = vsel %vm696, %v688, %v693
      %v698 = vrsqrt.pop %v565
      %v699 = vmul.f32 %v698, %v565
      %v700 = vmul.f32 %v699, %v698
      %v701 = vmul.f32 0.5, %v700
      %v702 = vsub.f32 1.5, %v701
      %v703 = vmul.f32 %v698, %v702
      %vm704 = vweird.f32 %v565
      %vm705 = vweird.f32 %v698
      %vm706 = vmor %vm704, %vm705
      %v707 = vsel %vm706, %v698, %v703
      %v708 = vrsqrt.pop %v566
      %v709 = vmul.f32 %v708, %v566
      %v710 = vmul.f32 %v709, %v708
      %v711 = vmul.f32 0.5, %v710
      %v712 = vsub.f32 1.5, %v711
      %v713 = vmul.f32 %v708, %v712
      %vm714 = vweird.f32 %v566
      %vm715 = vweird.f32 %v708
      %vm716 = vmor %vm714, %vm715
      %v717 = vsel %vm716, %v708, %v713
      %v718 = vrsqrt.pop %v567
      %v719 = vmul.f32 %v718, %v567
      %v720 = vmul.f32 %v719, %v718
      %v721 = vmul.f32 0.5, %v720
      %v722 = vsub.f32 1.5, %v721
      %v723 = vmul.f32 %v718, %v722
      %vm724 = vweird.f32 %v567
      %vm725 = vweird.f32 %v718
      %vm726 = vmor %vm724, %vm725
      %v727 = vsel %vm726, %v718, %v723
      %v728 = vmul.f32 %v456, %v577
      %v729 = vmul.f32 %v457, %v587
      %v730 = vmul.f32 %v458, %v597
      %v731 = vmul.f32 %v459, %v607
      %v732 = vmul.f32 %v460, %v617
      %v733 = vmul.f32 %v461, %v627
      %v734 = vmul.f32 %v462, %v637
      %v735 = vmul.f32 %v463, %v647
      %v736 = vmul.f32 %v464, %v657
      %v737 = vmul.f32 %v465, %v667
      %v738 = vmul.f32 %v466, %v677
      %v739 = vmul.f32 %v467, %v687
      %v740 = vmul.f32 %v468, %v697
      %v741 = vmul.f32 %v469, %v707
      %v742 = vmul.f32 %v470, %v717
      %v743 = vmul.f32 %v471, %v727
      %v745 = vperm.slane %v382, 0
      %v747 = vmul.f32 %v728, %v745
      %v748 = vmul.f32 %v729, %v745
      %v749 = vmul.f32 %v730, %v745
      %v750 = vmul.f32 %v731, %v745
      %v751 = vmul.f32 %v732, %v745
      %v752 = vmul.f32 %v733, %v745
      %v753 = vmul.f32 %v734, %v745
      %v754 = vmul.f32 %v735, %v745
      %v755 = vmul.f32 %v736, %v745
      %v756 = vmul.f32 %v737, %v745
      %v757 = vmul.f32 %v738, %v745
      %v758 = vmul.f32 %v739, %v745
      %v759 = vmul.f32 %v740, %v745
      %v760 = vmul.f32 %v741, %v745
      %v761 = vmul.f32 %v742, %v745
      %v762 = vmul.f32 %v743, %v745
      %v764 = vperm.slane %v383, 0
      %v766 = vadd.f32 %v747, %v764
      %v767 = vadd.f32 %v748, %v764
      %v768 = vadd.f32 %v749, %v764
      %v769 = vadd.f32 %v750, %v764
      %v770 = vadd.f32 %v751, %v764
      %v771 = vadd.f32 %v752, %v764
      %v772 = vadd.f32 %v753, %v764
      %v773 = vadd.f32 %v754, %v764
      %v774 = vadd.f32 %v755, %v764
      %v775 = vadd.f32 %v756, %v764
      %v776 = vadd.f32 %v757, %v764
      %v777 = vadd.f32 %v758, %v764
      %v778 = vadd.f32 %v759, %v764
      %v779 = vadd.f32 %v760, %v764
      %v780 = vadd.f32 %v761, %v764
      %v781 = vadd.f32 %v762, %v764
      %v782 = vpack.c.bf16 %v767, %v766
      %v783 = vpack.c.bf16 %v769, %v768
      %v784 = vpack.c.bf16 %v771, %v770
      %v785 = vpack.c.bf16 %v773, %v772
      %v786 = vpack.c.bf16 %v775, %v774
      %v787 = vpack.c.bf16 %v777, %v776
      %v788 = vpack.c.bf16 %v779, %v778
      %v789 = vpack.c.bf16 %v781, %v780
      %v790 = vld [vmem:[%s3] sm:$0xf]
      %v791 = vld [vmem:[%s3 + $0x4] sm:$0xf]
      %v792 = vld [vmem:[%s3 + $0x8] sm:$0xf]
      %v793 = vld [vmem:[%s3 + $0xc] sm:$0xf]
      %v794 = vld [vmem:[%s4] sm:$0x1]
      %v796 = vperm.slane %v794, 0
      %v802 = vunpack.c.l.b16 %v790
      %v803 = vunpack.c.l.b16 %v791
      %v804 = vunpack.c.l.b16 %v792
      %v805 = vunpack.c.l.b16 %v793
      %v806 = vpack.c.b16 %v803, %v802
      %v807 = vpack.c.b16 %v805, %v804
      %v811 = vsel %vm384, %v782, 0
      %v814 = vsel %vm384, %v783, 0
      %v817 = vsel %vm384, %v784, 0
      %v820 = vsel %vm384, %v785, 0
      %v823 = vsel %vm384, %v786, 0
      %v826 = vsel %vm384, %v787, 0
      %v829 = vsel %vm384, %v788, 0
      %v832 = vsel %vm384, %v789, 0
      %834 = vmatpush.bf16.msra.mxu0 0
      %835 = vmatpush.bf16.msra.mxu0 0
      %836 = vmatpush.bf16.msra.mxu0 0
      %837 = vmatpush.bf16.msra.mxu0 0
      %838 = vmatpush.bf16.msra.mxu0 0
      %839 = vmatpush.bf16.msra.mxu0 0
      %840 = vmatpush.bf16.msra.mxu0 %v807
      %841 = vmatpush.bf16.msra.mxu0 %v806
      %842 = vmatmul.bf16.gmra.mxu0 %v811
      %v843 = vpop.f32.mrf.mxu0
      %v844 = vadd.f32 %v796, %v843
      %v845 = vpop.f32.mrf.mxu0
      %v846 = vadd.f32 %v796, %v845
      %847 = vmatmul.bf16.gmra.mxu0 %v814
      %v848 = vpop.f32.mrf.mxu0
      %v849 = vadd.f32 %v796, %v848
      %v850 = vpop.f32.mrf.mxu0
      %v851 = vadd.f32 %v796, %v850
      %852 = vmatmul.bf16.gmra.mxu0 %v817
      %v853 = vpop.f32.mrf.mxu0
      %v854 = vadd.f32 %v796, %v853
      %v855 = vpop.f32.mrf.mxu0
      %v856 = vadd.f32 %v796, %v855
      %857 = vmatmul.bf16.gmra.mxu0 %v820
      %v858 = vpop.f32.mrf.mxu0
      %v859 = vadd.f32 %v796, %v858
      %v860 = vpop.f32.mrf.mxu0
      %v861 = vadd.f32 %v796, %v860
      %862 = vmatmul.bf16.gmra.mxu0 %v823
      %v863 = vpop.f32.mrf.mxu0
      %v864 = vadd.f32 %v796, %v863
      %v865 = vpop.f32.mrf.mxu0
      %v866 = vadd.f32 %v796, %v865
      %867 = vmatmul.bf16.gmra.mxu0 %v826
      %v868 = vpop.f32.mrf.mxu0
      %v869 = vadd.f32 %v796, %v868
      %v870 = vpop.f32.mrf.mxu0
      %v871 = vadd.f32 %v796, %v870
      %872 = vmatmul.bf16.gmra.mxu0 %v829
      %v873 = vpop.f32.mrf.mxu0
      %v874 = vadd.f32 %v796, %v873
      %v875 = vpop.f32.mrf.mxu0
      %v876 = vadd.f32 %v796, %v875
      %877 = vmatmul.bf16.gmra.mxu0 %v832
      %v878 = vpop.f32.mrf.mxu0
      %v879 = vadd.f32 %v796, %v878
      %v880 = vpop.f32.mrf.mxu0
      %v881 = vadd.f32 %v796, %v880
      %882 = vdwg.mxu0
      %v883 = vmul.f32 %v844, 0.35355338
      %v884 = vmul.f32 %v846, 0.35355338
      %v885 = vmul.f32 %v849, 0.35355338
      %v886 = vmul.f32 %v851, 0.35355338
      %v887 = vmul.f32 %v854, 0.35355338
      %v888 = vmul.f32 %v856, 0.35355338
      %v889 = vmul.f32 %v859, 0.35355338
      %v890 = vmul.f32 %v861, 0.35355338
      %v891 = vmul.f32 %v864, 0.35355338
      %v892 = vmul.f32 %v866, 0.35355338
      %v893 = vmul.f32 %v869, 0.35355338
      %v894 = vmul.f32 %v871, 0.35355338
      %v895 = vmul.f32 %v874, 0.35355338
      %v896 = vmul.f32 %v876, 0.35355338
      %v897 = vmul.f32 %v879, 0.35355338
      %v898 = vmul.f32 %v881, 0.35355338
      %v899 = vpack.c.bf16 %v883, %v883
      %v900 = vpack.c.bf16 %v884, %v884
      %v901 = vpack.c.bf16 %v885, %v885
      %v902 = vpack.c.bf16 %v886, %v886
      %v903 = vpack.c.bf16 %v887, %v887
      %v904 = vpack.c.bf16 %v888, %v888
      %v905 = vpack.c.bf16 %v889, %v889
      %v906 = vpack.c.bf16 %v890, %v890
      %v907 = vpack.c.bf16 %v891, %v891
      %v908 = vpack.c.bf16 %v892, %v892
      %v909 = vpack.c.bf16 %v893, %v893
      %v910 = vpack.c.bf16 %v894, %v894
      %v911 = vpack.c.bf16 %v895, %v895
      %v912 = vpack.c.bf16 %v896, %v896
      %v913 = vpack.c.bf16 %v897, %v897
      %v914 = vpack.c.bf16 %v898, %v898
      %vm915 = vcmask 257024
      %916 = vst.msk [vmem:[%s343] sm:$0xf] %vm915, %v899
      %917 = vst.msk [vmem:[%s343 + $0x4] sm:$0xf] %vm915, %v900
      %918 = vst.msk [vmem:[%s343 + $0x8] sm:$0xf] %vm915, %v901
      %919 = vst.msk [vmem:[%s343 + $0xc] sm:$0xf] %vm915, %v902
      %920 = vst.msk [vmem:[%s343 + $0x10] sm:$0xf] %vm915, %v903
      %921 = vst.msk [vmem:[%s343 + $0x14] sm:$0xf] %vm915, %v904
      %922 = vst.msk [vmem:[%s343 + $0x18] sm:$0xf] %vm915, %v905
      %923 = vst.msk [vmem:[%s343 + $0x1c] sm:$0xf] %vm915, %v906
      %924 = vst.msk [vmem:[%s343 + $0x20] sm:$0xf] %vm915, %v907
      %925 = vst.msk [vmem:[%s343 + $0x24] sm:$0xf] %vm915, %v908
      %926 = vst.msk [vmem:[%s343 + $0x28] sm:$0xf] %vm915, %v909
      %927 = vst.msk [vmem:[%s343 + $0x2c] sm:$0xf] %vm915, %v910
      %928 = vst.msk [vmem:[%s343 + $0x30] sm:$0xf] %vm915, %v911
      %929 = vst.msk [vmem:[%s343 + $0x34] sm:$0xf] %vm915, %v912
      %930 = vst.msk [vmem:[%s343 + $0x38] sm:$0xf] %vm915, %v913
      %931 = vst.msk [vmem:[%s343 + $0x3c] sm:$0xf] %vm915, %v914
      %v932 = vpack.c.bf16 %v844, %v844
      %v933 = vpack.c.bf16 %v846, %v846
      %v934 = vpack.c.bf16 %v849, %v849
      %v935 = vpack.c.bf16 %v851, %v851
      %v936 = vpack.c.bf16 %v854, %v854
      %v937 = vpack.c.bf16 %v856, %v856
      %v938 = vpack.c.bf16 %v859, %v859
      %v939 = vpack.c.bf16 %v861, %v861
      %v940 = vpack.c.bf16 %v864, %v864
      %v941 = vpack.c.bf16 %v866, %v866
      %v942 = vpack.c.bf16 %v869, %v869
      %v943 = vpack.c.bf16 %v871, %v871
      %v944 = vpack.c.bf16 %v874, %v874
      %v945 = vpack.c.bf16 %v876, %v876
      %v946 = vpack.c.bf16 %v879, %v879
      %v947 = vpack.c.bf16 %v881, %v881
      %964 = vrot.lane.b32.xlu0 %v932, 96
      %v965 = vpop.permute.xlu0 %964
      %966 = vrot.lane.b32.xlu0 %v933, 96
      %v967 = vpop.permute.xlu0 %966
      %968 = vrot.lane.b32.xlu0 %v934, 96
      %v969 = vpop.permute.xlu0 %968
      %970 = vrot.lane.b32.xlu0 %v935, 96
      %v971 = vpop.permute.xlu0 %970
      %972 = vrot.lane.b32.xlu0 %v936, 96
      %v973 = vpop.permute.xlu0 %972
      %974 = vrot.lane.b32.xlu0 %v937, 96
      %v975 = vpop.permute.xlu0 %974
      %976 = vrot.lane.b32.xlu0 %v938, 96
      %v977 = vpop.permute.xlu0 %976
      %978 = vrot.lane.b32.xlu0 %v939, 96
      %v979 = vpop.permute.xlu0 %978
      %980 = vrot.lane.b32.xlu0 %v940, 96
      %v981 = vpop.permute.xlu0 %980
      %982 = vrot.lane.b32.xlu0 %v941, 96
      %v983 = vpop.permute.xlu0 %982
      %984 = vrot.lane.b32.xlu0 %v942, 96
      %v985 = vpop.permute.xlu0 %984
      %986 = vrot.lane.b32.xlu0 %v943, 96
      %v987 = vpop.permute.xlu0 %986
      %988 = vrot.lane.b32.xlu0 %v944, 96
      %v989 = vpop.permute.xlu0 %988
      %990 = vrot.lane.b32.xlu0 %v945, 96
      %v991 = vpop.permute.xlu0 %990
      %992 = vrot.lane.b32.xlu0 %v946, 96
      %v993 = vpop.permute.xlu0 %992
      %994 = vrot.lane.b32.xlu0 %v947, 96
      %v995 = vpop.permute.xlu0 %994
      %1012 = vst.msk [vmem:[%s353] sm:$0xf] %vm915, %v965
      %1013 = vst.msk [vmem:[%s353 + $0x4] sm:$0xf] %vm915, %v967
      %1014 = vst.msk [vmem:[%s353 + $0x8] sm:$0xf] %vm915, %v969
      %1015 = vst.msk [vmem:[%s353 + $0xc] sm:$0xf] %vm915, %v971
      %1016 = vst.msk [vmem:[%s353 + $0x10] sm:$0xf] %vm915, %v973
      %1017 = vst.msk [vmem:[%s353 + $0x14] sm:$0xf] %vm915, %v975
      %1018 = vst.msk [vmem:[%s353 + $0x18] sm:$0xf] %vm915, %v977
      %1019 = vst.msk [vmem:[%s353 + $0x1c] sm:$0xf] %vm915, %v979
      %1020 = vst.msk [vmem:[%s353 + $0x20] sm:$0xf] %vm915, %v981
      %1021 = vst.msk [vmem:[%s353 + $0x24] sm:$0xf] %vm915, %v983
      %1022 = vst.msk [vmem:[%s353 + $0x28] sm:$0xf] %vm915, %v985
      %1023 = vst.msk [vmem:[%s353 + $0x2c] sm:$0xf] %vm915, %v987
      %1024 = vst.msk [vmem:[%s353 + $0x30] sm:$0xf] %vm915, %v989
      %1025 = vst.msk [vmem:[%s353 + $0x34] sm:$0xf] %vm915, %v991
      %1026 = vst.msk [vmem:[%s353 + $0x38] sm:$0xf] %vm915, %v993
      %1027 = vst.msk [vmem:[%s353 + $0x3c] sm:$0xf] %vm915, %v995
      %1028 = vrot.lane.b32.xlu0 %v932, 64
      %v1029 = vpop.permute.xlu0 %1028
      %1030 = vrot.lane.b32.xlu0 %v933, 64
      %v1031 = vpop.permute.xlu0 %1030
      %1032 = vrot.lane.b32.xlu0 %v934, 64
      %v1033 = vpop.permute.xlu0 %1032
      %1034 = vrot.lane.b32.xlu0 %v935, 64
      %v1035 = vpop.permute.xlu0 %1034
      %1036 = vrot.lane.b32.xlu0 %v936, 64
      %v1037 = vpop.permute.xlu0 %1036
      %1038 = vrot.lane.b32.xlu0 %v937, 64
      %v1039 = vpop.permute.xlu0 %1038
      %1040 = vrot.lane.b32.xlu0 %v938, 64
      %v1041 = vpop.permute.xlu0 %1040
      %1042 = vrot.lane.b32.xlu0 %v939, 64
      %v1043 = vpop.permute.xlu0 %1042
      %1044 = vrot.lane.b32.xlu0 %v940, 64
      %v1045 = vpop.permute.xlu0 %1044
      %1046 = vrot.lane.b32.xlu0 %v941, 64
      %v1047 = vpop.permute.xlu0 %1046
      %1048 = vrot.lane.b32.xlu0 %v942, 64
      %v1049 = vpop.permute.xlu0 %1048
      %1050 = vrot.lane.b32.xlu0 %v943, 64
      %v1051 = vpop.permute.xlu0 %1050
      %1052 = vrot.lane.b32.xlu0 %v944, 64
      %v1053 = vpop.permute.xlu0 %1052
      %1054 = vrot.lane.b32.xlu0 %v945, 64
      %v1055 = vpop.permute.xlu0 %1054
      %1056 = vrot.lane.b32.xlu0 %v946, 64
      %v1057 = vpop.permute.xlu0 %1056
      %1058 = vrot.lane.b32.xlu0 %v947, 64
      %v1059 = vpop.permute.xlu0 %1058
      %1076 = vst.msk [vmem:[%s363] sm:$0xf] %vm915, %v1029
      %1077 = vst.msk [vmem:[%s363 + $0x4] sm:$0xf] %vm915, %v1031
      %1078 = vst.msk [vmem:[%s363 + $0x8] sm:$0xf] %vm915, %v1033
      %1079 = vst.msk [vmem:[%s363 + $0xc] sm:$0xf] %vm915, %v1035
      %1080 = vst.msk [vmem:[%s363 + $0x10] sm:$0xf] %vm915, %v1037
      %1081 = vst.msk [vmem:[%s363 + $0x14] sm:$0xf] %vm915, %v1039
      %1082 = vst.msk [vmem:[%s363 + $0x18] sm:$0xf] %vm915, %v1041
      %1083 = vst.msk [vmem:[%s363 + $0x1c] sm:$0xf] %vm915, %v1043
      %1084 = vst.msk [vmem:[%s363 + $0x20] sm:$0xf] %vm915, %v1045
      %1085 = vst.msk [vmem:[%s363 + $0x24] sm:$0xf] %vm915, %v1047
      %1086 = vst.msk [vmem:[%s363 + $0x28] sm:$0xf] %vm915, %v1049
      %1087 = vst.msk [vmem:[%s363 + $0x2c] sm:$0xf] %vm915, %v1051
      %1088 = vst.msk [vmem:[%s363 + $0x30] sm:$0xf] %vm915, %v1053
      %1089 = vst.msk [vmem:[%s363 + $0x34] sm:$0xf] %vm915, %v1055
      %1090 = vst.msk [vmem:[%s363 + $0x38] sm:$0xf] %vm915, %v1057
      %1091 = vst.msk [vmem:[%s363 + $0x3c] sm:$0xf] %vm915, %v1059
      %s1092 = smul.u32 16, %s24
      %p1093 = scmp.lt.s32.totalorder %s23, 1
      %s1094 = scalar_select %p1093, %s23, 1
      %p1095 = scmp.lt.s32.totalorder %s1092, 31
      %s1096 = scalar_select %p1095, %s1092, 31
      %s1097 = smul.addr %s1094, 32
      %s1098 = sadd.s32 %s1096, %s1097
      %s1099 = smul.addr %s1098, 4
      %s1100 = scalar_lea.vmem %s5, %s1099
      %s1101 = smul.u32 16, %s24
      %p1102 = scmp.lt.s32.totalorder %s23, 1
      %s1103 = scalar_select %p1102, %s23, 1
      %p1104 = scmp.lt.s32.totalorder %s1101, 31
      %s1105 = scalar_select %p1104, %s1101, 31
      %s1106 = smul.addr %s1103, 32
      %s1107 = sadd.s32 %s1105, %s1106
      %s1108 = smul.addr %s1107, 4
      %s1109 = scalar_lea.vmem %s6, %s1108
      %s1110 = smul.u32 16, %s24
      %p1111 = scmp.lt.s32.totalorder %s23, 1
      %s1112 = scalar_select %p1111, %s23, 1
      %p1113 = scmp.lt.s32.totalorder %s1110, 31
      %s1114 = scalar_select %p1113, %s1110, 31
      %s1115 = smul.addr %s1112, 32
      %s1116 = sadd.s32 %s1114, %s1115
      %s1117 = smul.addr %s1116, 4
      %s1118 = scalar_lea.vmem %s7, %s1117
      // Predicated region
      $region41: #{tpu_custom_call.1} parent=39 // pred_check
        %p1119 = pneg %p163
      $region42: #{tpu_custom_call.1} parent=39 // pred_check_branch
        %1121 = sbr.rel (%p1119) target = $region44
      $region43: #{tpu_custom_call.1} parent=39 // pred_region
        %s1122 = smul.u32 16, %s24
      $region44: #{tpu_custom_call.1} parent=39 // pred_fallthru
        _
      // Predicated region
      $region45: #{tpu_custom_call.1} parent=39 // pred_check
        %p1123 = pneg %p191
      $region46: #{tpu_custom_call.1} parent=39 // pred_check_branch
        %1125 = sbr.rel (%p1123) target = $region48
      $region47: #{tpu_custom_call.1} parent=39 // pred_region
        %s1126 = smul.u32 16, %s24
      $region48: #{tpu_custom_call.1} parent=39 // pred_fallthru
        _
      // Predicated region
      $region49: #{tpu_custom_call.1} parent=39 // pred_check
        %p1127 = pneg %p219
      $region50: #{tpu_custom_call.1} parent=39 // pred_check_branch
        %1129 = sbr.rel (%p1127) target = $region52
      $region51: #{tpu_custom_call.1} parent=39 // pred_region
        %s1130 = smul.u32 16, %s24
      $region52: #{tpu_custom_call.1} parent=39 // pred_fallthru
        _
    $region40: #{tpu_custom_call.1} parent=5 // pred_fallthru
      _
    %p1131 = scmp.le.s32.totalorder 2, %s14
    // Predicated region
    $region53: #{tpu_custom_call.1} parent=5 // pred_check
      %p1132 = pneg %p1131
    $region54: #{tpu_custom_call.1} parent=5 // pred_check_branch
      %1134 = sbr.rel (%p1132) target = $region56
    $region55: #{tpu_custom_call.1} parent=5 // pred_region
      %s1135 = ssub.s32 %s14, 2
      // Predicated region
      $region57: #{tpu_custom_call.1} parent=55 // pred_check
        %p1136 = pneg %p169
      $region58: #{tpu_custom_call.1} parent=55 // pred_check_branch
        %1138 = sbr.rel (%p1136) target = $region60
      $region59: #{tpu_custom_call.1} parent=55 // pred_region
        %s1139 = smul.u32 16, %s26
        %p1140 = scmp.lt.s32.totalorder %s25, 1
        %s1141 = scalar_select %p1140, %s25, 1
        %p1142 = scmp.lt.s32.totalorder %s1139, 31
        %s1143 = scalar_select %p1142, %s1139, 31
        %s1144 = smul.addr %s1141, 32
        %s1145 = sadd.s32 %s1143, %s1144
        %s1146 = smul.addr %s1145, 4
        %s1147 = scalar_lea.vmem %s5, %s1146
      $region60: #{tpu_custom_call.1} parent=55 // pred_fallthru
        _
      // Predicated region
      $region61: #{tpu_custom_call.1} parent=55 // pred_check
        %p1148 = pneg %p197
      $region62: #{tpu_custom_call.1} parent=55 // pred_check_branch
        %1150 = sbr.rel (%p1148) target = $region64
      $region63: #{tpu_custom_call.1} parent=55 // pred_region
        %s1151 = smul.u32 16, %s26
        %p1152 = scmp.lt.s32.totalorder %s25, 1
        %s1153 = scalar_select %p1152, %s25, 1
        %p1154 = scmp.lt.s32.totalorder %s1151, 31
        %s1155 = scalar_select %p1154, %s1151, 31
        %s1156 = smul.addr %s1153, 32
        %s1157 = sadd.s32 %s1155, %s1156
        %s1158 = smul.addr %s1157, 4
        %s1159 = scalar_lea.vmem %s6, %s1158
      $region64: #{tpu_custom_call.1} parent=55 // pred_fallthru
        _
      // Predicated region
      $region65: #{tpu_custom_call.1} parent=55 // pred_check
        %p1160 = pneg %p225
      $region66: #{tpu_custom_call.1} parent=55 // pred_check_branch
        %1162 = sbr.rel (%p1160) target = $region68
      $region67: #{tpu_custom_call.1} parent=55 // pred_region
        %s1163 = smul.u32 16, %s26
        %p1164 = scmp.lt.s32.totalorder %s25, 1
        %s1165 = scalar_select %p1164, %s25, 1
        %p1166 = scmp.lt.s32.totalorder %s1163, 31
        %s1167 = scalar_select %p1166, %s1163, 31
        %s1168 = smul.addr %s1165, 32
        %s1169 = sadd.s32 %s1167, %s1168
        %s1170 = smul.addr %s1169, 4
        %s1171 = scalar_lea.vmem %s7, %s1170
      $region68: #{tpu_custom_call.1} parent=55 // pred_fallthru
        _
    $region56: #{tpu_custom_call.1} parent=5 // pred_fallthru
      _
  $region6: #{tpu_custom_call.1} parent=0 // loop_footer
    %s18 = sadd.s32 1, %s14
  $region7: #{tpu_custom_call.1} parent=0 // loop_footer_branch
    %13 = sbr.rel target = $region3
  $region8: #{tpu_custom_call.1} parent=0 // loop_exit
    _

</llo_original>
